<compile_context>
chip_gen: v7x
topology: tpu7x:2x2x1
jax: 0.10.0
libtpu: 0.0.40
codegen_flags: <defaults>
</compile_context>

<pallas_src>
import jax
import jax.numpy as jnp
from jax.experimental import pallas as pl
from jax.experimental.pallas import tpu as pltpu


# ----------------------------- fused Pallas kernel -----------------------------

def _fcn8sd_fused_kernel(xs_ref, bbw_ref, bbb_ref, w1t_ref, bnb_ref,
                         c2w_ref, c2b_ref, up_ref, o_ref, pad_ref):
    # xs_ref : (N, hw, Cin)        subsampled input, spatial-major
    # bbw_ref: (Cin, Cbb)  bbb_ref: (1, Cbb)
    # w1t_ref: (9, Cmid, Cbb)      conv3x3 weights, eval-BN scale folded,
    #                              per-tap, pre-transposed to (out, in)
    # bnb_ref: (Cmid, 1)           folded eval-BN bias
    # c2w_ref: (K, Cmid)  c2b_ref: (K, 1)   conv1x1 weight + bias
    # up_ref : (hw, HWo_pad)       kron(Wy, Wx) bilinear matrix (lane-padded)
    # o_ref  : (N, K, HWo_pad)     lane-dense output
    # pad_ref: (N, h+2, w+2, Cbb)  VMEM zero-padded feature plane
    n_img, hp, wp, cbb = pad_ref.shape
    h, w = hp - 2, wp - 2
    hw = h * w

    # --- synthetic backbone: 1x1 conv (Cin -> Cbb) + ReLU, one batched matmul ---
    x2 = xs_ref[...].reshape(n_img * hw, xs_ref.shape[-1])       # (N*hw, Cin)
    feat = jnp.dot(x2, bbw_ref[...], preferred_element_type=jnp.float32)
    feat = jnp.maximum(feat + bbb_ref[...], 0.0)                 # (N*hw, Cbb)

    # --- FCNFinalBlock.conv1: 3x3 conv (pad=1, no bias) + folded BN + ReLU ---
    # Nine accumulated taps read straight from the zero-padded plane (no
    # im2col scratch, no masked column stores).  trans_b contraction puts the
    # result directly in (Cmid, N*hw) layout, so no transpose is ever needed.
    pad_ref[...] = jnp.zeros(pad_ref.shape, pad_ref.dtype)
    pad_ref[:, 1:h + 1, 1:w + 1, :] = feat.reshape(n_img, h, w, cbb)
    acc = None
    for dy in range(3):
        for dx in range(3):
            sl = pad_ref[:, dy:dy + h, dx:dx + w, :].reshape(n_img * hw, cbb)
            d = jax.lax.dot_general(
                w1t_ref[dy * 3 + dx], sl,
                dimension_numbers=(((1,), (1,)), ((), ())),
                preferred_element_type=jnp.float32)              # (Cmid, N*hw)
            acc = d if acc is None else acc + d
    mid_t = jnp.maximum(acc + bnb_ref[...], 0.0)                 # (Cmid, N*hw)

    # Dropout(p=0.1) is identity in eval mode.
    # TODO(synk): stochastic training-mode dropout not implemented.

    # --- conv2 (1x1 + bias) and bilinear upsample (align_corners=True),
    #     reassociated: out_n = c2w @ (mid_n @ up) + b.  Bias commutes with
    #     the upsample since each interpolation column sums to one.  Both
    #     matmuls keep HWo as a dense 128-aligned lane dimension. ---
    up = up_ref[...]
    c2w = c2w_ref[...]
    c2b = c2b_ref[...]
    for n in range(n_img):                                       # static, tiny
        t_n = jnp.dot(mid_t[:, n * hw:(n + 1) * hw], up,
                      preferred_element_type=jnp.float32)        # (Cmid, HWo)
        out_n = jnp.dot(c2w, t_n, preferred_element_type=jnp.float32) + c2b
        o_ref[n] = out_n.astype(o_ref.dtype)                     # (K, HWo_pad)


# ----------------------------- helpers -----------------------------

def _kaiming_uniform(key, shape, fan_in):
    bound = jnp.sqrt(6.0 / fan_in)
    return jax.random.uniform(key, shape, jnp.float32, -bound, bound)


def _interp_matrix(out_size, in_size):
    """Row-interpolation matrix for bilinear, align_corners=True."""
    if out_size == 1:
        return jnp.zeros((1, in_size), jnp.float32).at[0, 0].set(1.0)
    scale = (in_size - 1) / (out_size - 1)
    src = jnp.arange(out_size, dtype=jnp.float32) * scale
    i0 = jnp.clip(jnp.floor(src).astype(jnp.int32), 0, in_size - 1)
    i1 = jnp.clip(i0 + 1, 0, in_size - 1)
    frac = src - i0.astype(jnp.float32)
    rows = jnp.arange(out_size)
    m = jnp.zeros((out_size, in_size), jnp.float32)
    m = m.at[rows, i0].add(1.0 - frac)
    m = m.at[rows, i1].add(frac)
    return m


# ----------------------------- model wrapper -----------------------------

class FCN8sdPallas:
    """FCN8sd with a synthetic stride-4 1x1-conv backbone (the backbone is a
    constructor argument in the PyTorch module). aux=False, fixed_size=True."""

    def __init__(self, key, in_channels=3, backbone_out_channels=32,
                 num_classes=21, in_size=(16, 16), backbone_stride=4,
                 bottleneck_factor=4):
        assert backbone_out_channels % bottleneck_factor == 0
        self.in_size = in_size
        self.stride = backbone_stride
        self.num_classes = num_classes
        self.cin = in_channels
        cbb = backbone_out_channels
        cmid = cbb // bottleneck_factor
        self.cbb, self.cmid = cbb, cmid

        k = jax.random.split(key, 5)
        # backbone: stride subsample + 1x1 conv (Cin -> Cbb) + ReLU
        self.bb_w = _kaiming_uniform(k[0], (in_channels, cbb), fan_in=in_channels)
        self.bb_b = jnp.zeros((1, cbb), jnp.float32)

        # FCNFinalBlock.conv1 (3x3, no bias), im2col row order:
        # row (dy*3+dx)*Cbb + ci  <->  torch weight [co, ci, dy, dx]
        c1_w = _kaiming_uniform(k[1], (9 * cbb, cmid), fan_in=9 * cbb)
        # eval-mode BatchNorm: fold the scale into conv1 weights, keep bias.
        gamma = 1.0 + 0.1 * jax.random.normal(k[2], (cmid,), jnp.float32)
        beta = 0.1 * jax.random.normal(k[3], (cmid,), jnp.float32)
        running_mean = jnp.zeros((cmid,), jnp.float32)
        running_var = jnp.ones((cmid,), jnp.float32)
        eps = 1e-5
        scale = gamma / jnp.sqrt(running_var + eps)
        w1_folded = c1_w * scale[None, :]                        # (9*Cbb, Cmid)
        # Per-tap, pre-transposed to (out, in) so the kernel's 9 taps are
        # trans_b contractions producing (Cmid, N*hw) directly.
        self.w1t = w1_folded.reshape(9, cbb, cmid).transpose(0, 2, 1)
        self.bn_bias = (beta - running_mean * scale).reshape(cmid, 1)

        # FCNFinalBlock.conv2: 1x1 conv with bias.
        self.c2_w = _kaiming_uniform(k[4], (num_classes, cmid), fan_in=cmid)
        self.c2_b = jnp.zeros((num_classes, 1), jnp.float32)

        # Bilinear (align_corners=True) upsample as one kron(Wy, Wx) matrix,
        # columns padded so the kernel's output last dim is 128-aligned.
        # NOTE: grows ~quartically with in_size; switch to the separable
        # two-matmul form (Wx then Wy) + explicit vmem_limit_bytes beyond
        # roughly 64x64 (v7x has 64 MiB VMEM / core, default scoped 32 MiB).
        Hout, Wout = in_size
        self.hin = -(-Hout // backbone_stride)   # == len(range(0, H, s))
        self.win = -(-Wout // backbone_stride)
        self.hwo = Hout * Wout
        self.hwo_pad = ((self.hwo + 127) // 128) * 128
        wy = _interp_matrix(Hout, self.hin)                      # (Hout, hin)
        wx = _interp_matrix(Wout, self.win)                      # (Wout, win)
        # up[y*win + x, Y*Wout + X] = wy[Y, y] * wx[X, x]
        up = jnp.einsum('Yy,Xx->yxYX', wy, wx).reshape(
            self.hin * self.win, self.hwo)
        if self.hwo_pad != self.hwo:
            up = jnp.pad(up, ((0, 0), (0, self.hwo_pad - self.hwo)))
        self.upmat = up
        assert self.upmat.size * 4 < 8 * 1024 * 1024, (
            "dense upsample matrix too large; use the separable form")

    def __call__(self, x_nchw):
        N = x_nchw.shape[0]
        s = self.stride
        Hout, Wout = self.in_size
        hw = self.hin * self.win
        HWo, HWo_pad = self.hwo, self.hwo_pad
        K, cbb, cmid, cin = self.num_classes, self.cbb, self.cmid, self.cin

        # Backbone front end: stride-s subsample (stride^2 smaller than x, so
        # this tiny XLA slice/transpose is negligible); everything downstream
        # runs inside the single fused kernel invocation.
        xs = x_nchw[:, :, ::s, ::s]
        assert xs.shape[2] == self.hin and xs.shape[3] == self.win
        xs2d = jnp.transpose(xs, (0, 2, 3, 1)).reshape(N, hw, cin)

        flops = (2 * N * hw * (cin * cbb + 9 * cbb * cmid)
                 + 2 * N * HWo_pad * (cmid * hw + K * cmid))
        operands = (xs2d, self.bb_w, self.bb_b, self.w1t, self.bn_bias,
                    self.c2_w, self.c2_b, self.upmat)
        bytes_accessed = (sum(int(a.size) * 4 for a in operands)
                          + N * K * HWo_pad * 4)

        # Single grid step: the batch is folded into matmul M / lane dims, so
        # there is no per-image pipeline overhead.
        out_flat = pl.pallas_call(
            _fcn8sd_fused_kernel,
            out_shape=jax.ShapeDtypeStruct((N, K, HWo_pad), jnp.float32),
            grid=(1,),
            in_specs=[
                pl.BlockSpec((N, hw, cin), lambda i: (0, 0, 0)),
                pl.BlockSpec((cin, cbb), lambda i: (0, 0)),
                pl.BlockSpec((1, cbb), lambda i: (0, 0)),
                pl.BlockSpec((9, cmid, cbb), lambda i: (0, 0, 0)),
                pl.BlockSpec((cmid, 1), lambda i: (0, 0)),
                pl.BlockSpec((K, cmid), lambda i: (0, 0)),
                pl.BlockSpec((K, 1), lambda i: (0, 0)),
                pl.BlockSpec((hw, HWo_pad), lambda i: (0, 0)),
            ],
            out_specs=pl.BlockSpec((N, K, HWo_pad), lambda i: (0, 0, 0)),
            scratch_shapes=[
                pltpu.VMEM((N, self.hin + 2, self.win + 2, cbb), jnp.float32),
            ],
            compiler_params=pltpu.CompilerParams(
                dimension_semantics=("arbitrary",)),
            cost_estimate=pl.CostEstimate(
                flops=flops, transcendentals=0, bytes_accessed=bytes_accessed),
        )(*operands)

        # Free slice/reshape: (N, K, HWo_pad) -> NCHW (N, K, Hout, Wout).
        return out_flat[:, :, :HWo].reshape(N, K, Hout, Wout)


if __name__ == "__main__":
    key = jax.random.PRNGKey(0)
    k_param, k_x = jax.random.split(key)

    model = FCN8sdPallas(
        k_param, in_channels=3, backbone_out_channels=32,
        num_classes=21, in_size=(16, 16), backbone_stride=4)

    x = jax.random.normal(k_x, (2, 3, 16, 16), jnp.float32)   # NCHW input
    out = jax.block_until_ready(model(x))
    assert out.shape == (2, 21, 16, 16), out.shape
    print("KERNEL_OK")
</pallas_src>

<mosaic_0001>
module attributes {stable_mosaic.version = 11 : i64} {
  func.func @_fcn8sd_fused_kernel(%arg0: i32, %arg1: memref<2x16x3xf32, #tpu.memory_space<vmem>>, %arg2: memref<3x32xf32, #tpu.memory_space<vmem>>, %arg3: memref<1x32xf32, #tpu.memory_space<vmem>>, %arg4: memref<9x8x32xf32, #tpu.memory_space<vmem>>, %arg5: memref<8x1xf32, #tpu.memory_space<vmem>>, %arg6: memref<21x8xf32, #tpu.memory_space<vmem>>, %arg7: memref<21x1xf32, #tpu.memory_space<vmem>>, %arg8: memref<16x256xf32, #tpu.memory_space<vmem>>, %arg9: memref<2x21x256xf32, #tpu.memory_space<vmem>>, %arg10: memref<2x6x6x32xf32, #tpu.memory_space<vmem>>) attributes {dimension_semantics = [#tpu.dimension_semantics<arbitrary>], iteration_bounds = array<i64: 1>, scalar_prefetch = 0 : i64, scratch_operands = 1 : i64, tpu.core_type = #tpu.core_type<tc>, window_params = [{pipeline_mode = #tpu.pipeline_mode<synchronous>, transform_indices = @transform_0, window_bounds = array<i64: 2, 16, 3>}, {pipeline_mode = #tpu.pipeline_mode<synchronous>, transform_indices = @transform_1, window_bounds = array<i64: 3, 32>}, {pipeline_mode = #tpu.pipeline_mode<synchronous>, transform_indices = @transform_2, window_bounds = array<i64: 1, 32>}, {pipeline_mode = #tpu.pipeline_mode<synchronous>, transform_indices = @transform_3, window_bounds = array<i64: 9, 8, 32>}, {pipeline_mode = #tpu.pipeline_mode<synchronous>, transform_indices = @transform_4, window_bounds = array<i64: 8, 1>}, {pipeline_mode = #tpu.pipeline_mode<synchronous>, transform_indices = @transform_5, window_bounds = array<i64: 21, 8>}, {pipeline_mode = #tpu.pipeline_mode<synchronous>, transform_indices = @transform_6, window_bounds = array<i64: 21, 1>}, {pipeline_mode = #tpu.pipeline_mode<synchronous>, transform_indices = @transform_7, window_bounds = array<i64: 16, 256>}, {pipeline_mode = #tpu.pipeline_mode<synchronous>, transform_indices = @transform_8, window_bounds = array<i64: 2, 21, 256>}]} {
    %c0 = arith.constant 0 : index
    %c0_0 = arith.constant 0 : index
    %c0_1 = arith.constant 0 : index
    %0 = vector.load %arg1[%c0, %c0_0, %c0_1] : memref<2x16x3xf32, #tpu.memory_space<vmem>>, vector<2x16x3xf32>
    %1 = vector.shape_cast %0 : vector<2x16x3xf32> to vector<32x3xf32>
    %c0_2 = arith.constant 0 : index
    %c0_3 = arith.constant 0 : index
    %2 = vector.load %arg2[%c0_2, %c0_3] : memref<3x32xf32, #tpu.memory_space<vmem>>, vector<3x32xf32>
    %cst = arith.constant dense<0.000000e+00> : vector<32x32xf32>
    %3 = tpu.matmul %1, %2, %cst {dimension_numbers = #tpu.dot_dimension_numbers<[1], [0], [0], [1], [0, 0, 1, 1], [], []>} : vector<32x3xf32>, vector<3x32xf32>, vector<32x32xf32> -> vector<32x32xf32>
    %c0_4 = arith.constant 0 : index
    %c0_5 = arith.constant 0 : index
    %4 = vector.load %arg3[%c0_4, %c0_5] : memref<1x32xf32, #tpu.memory_space<vmem>>, vector<1x32xf32>
    %5 = vector.broadcast %4 : vector<1x32xf32> to vector<32x32xf32>
    %6 = arith.addf %3, %5 : vector<32x32xf32>
    %cst_6 = arith.constant 0.000000e+00 : f32
    %7 = vector.broadcast %cst_6 : f32 to vector<32x32xf32>
    %8 = arith.maximumf %6, %7 : vector<32x32xf32>
    %cst_7 = arith.constant 0.000000e+00 : f32
    %9 = vector.broadcast %cst_7 : f32 to vector<2x6x6x32xf32>
    %c0_8 = arith.constant 0 : index
    %c0_9 = arith.constant 0 : index
    %c0_10 = arith.constant 0 : index
    %c0_11 = arith.constant 0 : index
    %10 = vector.load %arg10[%c0_8, %c0_9, %c0_10, %c0_11] : memref<2x6x6x32xf32, #tpu.memory_space<vmem>>, vector<2x6x6x32xf32>
    tpu.vector_store %arg10[%c0_8, %c0_9, %c0_10, %c0_11], %9 {strides = array<i32>} : memref<2x6x6x32xf32, #tpu.memory_space<vmem>>, vector<2x6x6x32xf32>,
    %11 = vector.shape_cast %8 : vector<32x32xf32> to vector<2x4x4x32xf32>
    %c0_12 = arith.constant 0 : index
    %c1 = arith.constant 1 : index
    %c1_13 = arith.constant 1 : index
    %c0_14 = arith.constant 0 : index
    %12 = vector.load %arg10[%c0_12, %c1, %c1_13, %c0_14] : memref<2x6x6x32xf32, #tpu.memory_space<vmem>>, vector<2x4x4x32xf32>
    tpu.vector_store %arg10[%c0_12, %c1, %c1_13, %c0_14], %11 {strides = array<i32>} : memref<2x6x6x32xf32, #tpu.memory_space<vmem>>, vector<2x4x4x32xf32>,
    %c0_15 = arith.constant 0 : index
    %c0_16 = arith.constant 0 : index
    %c0_17 = arith.constant 0 : index
    %c0_18 = arith.constant 0 : index
    %13 = vector.load %arg10[%c0_15, %c0_16, %c0_17, %c0_18] : memref<2x6x6x32xf32, #tpu.memory_space<vmem>>, vector<2x4x4x32xf32>
    %14 = vector.shape_cast %13 : vector<2x4x4x32xf32> to vector<32x32xf32>
    %c0_19 = arith.constant 0 : index
    %c0_20 = arith.constant 0 : index
    %c0_21 = arith.constant 0 : index
    %15 = vector.load %arg4[%c0_19, %c0_20, %c0_21] : memref<9x8x32xf32, #tpu.memory_space<vmem>>, vector<1x8x32xf32>
    %16 = vector.shape_cast %15 : vector<1x8x32xf32> to vector<8x32xf32>
    %cst_22 = arith.constant dense<0.000000e+00> : vector<8x32xf32>
    %17 = tpu.matmul %16, %14, %cst_22 {dimension_numbers = #tpu.dot_dimension_numbers<[1], [1], [0], [0], [0, 0, 1, 0], [], []>} : vector<8x32xf32>, vector<32x32xf32>, vector<8x32xf32> -> vector<8x32xf32>
    %c0_23 = arith.constant 0 : index
    %c0_24 = arith.constant 0 : index
    %c1_25 = arith.constant 1 : index
    %c0_26 = arith.constant 0 : index
    %18 = vector.load %arg10[%c0_23, %c0_24, %c1_25, %c0_26] : memref<2x6x6x32xf32, #tpu.memory_space<vmem>>, vector<2x4x4x32xf32>
    %19 = vector.shape_cast %18 : vector<2x4x4x32xf32> to vector<32x32xf32>
    %c1_27 = arith.constant 1 : index
    %c0_28 = arith.constant 0 : index
    %c0_29 = arith.constant 0 : index
    %20 = vector.load %arg4[%c1_27, %c0_28, %c0_29] : memref<9x8x32xf32, #tpu.memory_space<vmem>>, vector<1x8x32xf32>
    %21 = vector.shape_cast %20 : vector<1x8x32xf32> to vector<8x32xf32>
    %cst_30 = arith.constant dense<0.000000e+00> : vector<8x32xf32>
    %22 = tpu.matmul %21, %19, %cst_30 {dimension_numbers = #tpu.dot_dimension_numbers<[1], [1], [0], [0], [0, 0, 1, 0], [], []>} : vector<8x32xf32>, vector<32x32xf32>, vector<8x32xf32> -> vector<8x32xf32>
    %23 = arith.addf %17, %22 : vector<8x32xf32>
    %c0_31 = arith.constant 0 : index
    %c0_32 = arith.constant 0 : index
    %c2 = arith.constant 2 : index
    %c0_33 = arith.constant 0 : index
    %24 = vector.load %arg10[%c0_31, %c0_32, %c2, %c0_33] : memref<2x6x6x32xf32, #tpu.memory_space<vmem>>, vector<2x4x4x32xf32>
    %25 = vector.shape_cast %24 : vector<2x4x4x32xf32> to vector<32x32xf32>
    %c2_34 = arith.constant 2 : index
    %c0_35 = arith.constant 0 : index
    %c0_36 = arith.constant 0 : index
    %26 = vector.load %arg4[%c2_34, %c0_35, %c0_36] : memref<9x8x32xf32, #tpu.memory_space<vmem>>, vector<1x8x32xf32>
    %27 = vector.shape_cast %26 : vector<1x8x32xf32> to vector<8x32xf32>
    %cst_37 = arith.constant dense<0.000000e+00> : vector<8x32xf32>
    %28 = tpu.matmul %27, %25, %cst_37 {dimension_numbers = #tpu.dot_dimension_numbers<[1], [1], [0], [0], [0, 0, 1, 0], [], []>} : vector<8x32xf32>, vector<32x32xf32>, vector<8x32xf32> -> vector<8x32xf32>
    %29 = arith.addf %23, %28 : vector<8x32xf32>
    %c0_38 = arith.constant 0 : index
    %c1_39 = arith.constant 1 : index
    %c0_40 = arith.constant 0 : index
    %c0_41 = arith.constant 0 : index
    %30 = vector.load %arg10[%c0_38, %c1_39, %c0_40, %c0_41] : memref<2x6x6x32xf32, #tpu.memory_space<vmem>>, vector<2x4x4x32xf32>
    %31 = vector.shape_cast %30 : vector<2x4x4x32xf32> to vector<32x32xf32>
    %c3 = arith.constant 3 : index
    %c0_42 = arith.constant 0 : index
    %c0_43 = arith.constant 0 : index
    %32 = vector.load %arg4[%c3, %c0_42, %c0_43] : memref<9x8x32xf32, #tpu.memory_space<vmem>>, vector<1x8x32xf32>
    %33 = vector.shape_cast %32 : vector<1x8x32xf32> to vector<8x32xf32>
    %cst_44 = arith.constant dense<0.000000e+00> : vector<8x32xf32>
    %34 = tpu.matmul %33, %31, %cst_44 {dimension_numbers = #tpu.dot_dimension_numbers<[1], [1], [0], [0], [0, 0, 1, 0], [], []>} : vector<8x32xf32>, vector<32x32xf32>, vector<8x32xf32> -> vector<8x32xf32>
    %35 = arith.addf %29, %34 : vector<8x32xf32>
    %c0_45 = arith.constant 0 : index
    %c1_46 = arith.constant 1 : index
    %c1_47 = arith.constant 1 : index
    %c0_48 = arith.constant 0 : index
    %36 = vector.load %arg10[%c0_45, %c1_46, %c1_47, %c0_48] : memref<2x6x6x32xf32, #tpu.memory_space<vmem>>, vector<2x4x4x32xf32>
    %37 = vector.shape_cast %36 : vector<2x4x4x32xf32> to vector<32x32xf32>
    %c4 = arith.constant 4 : index
    %c0_49 = arith.constant 0 : index
    %c0_50 = arith.constant 0 : index
    %38 = vector.load %arg4[%c4, %c0_49, %c0_50] : memref<9x8x32xf32, #tpu.memory_space<vmem>>, vector<1x8x32xf32>
    %39 = vector.shape_cast %38 : vector<1x8x32xf32> to vector<8x32xf32>
    %cst_51 = arith.constant dense<0.000000e+00> : vector<8x32xf32>
    %40 = tpu.matmul %39, %37, %cst_51 {dimension_numbers = #tpu.dot_dimension_numbers<[1], [1], [0], [0], [0, 0, 1, 0], [], []>} : vector<8x32xf32>, vector<32x32xf32>, vector<8x32xf32> -> vector<8x32xf32>
    %41 = arith.addf %35, %40 : vector<8x32xf32>
    %c0_52 = arith.constant 0 : index
    %c1_53 = arith.constant 1 : index
    %c2_54 = arith.constant 2 : index
    %c0_55 = arith.constant 0 : index
    %42 = vector.load %arg10[%c0_52, %c1_53, %c2_54, %c0_55] : memref<2x6x6x32xf32, #tpu.memory_space<vmem>>, vector<2x4x4x32xf32>
    %43 = vector.shape_cast %42 : vector<2x4x4x32xf32> to vector<32x32xf32>
    %c5 = arith.constant 5 : index
    %c0_56 = arith.constant 0 : index
    %c0_57 = arith.constant 0 : index
    %44 = vector.load %arg4[%c5, %c0_56, %c0_57] : memref<9x8x32xf32, #tpu.memory_space<vmem>>, vector<1x8x32xf32>
    %45 = vector.shape_cast %44 : vector<1x8x32xf32> to vector<8x32xf32>
    %cst_58 = arith.constant dense<0.000000e+00> : vector<8x32xf32>
    %46 = tpu.matmul %45, %43, %cst_58 {dimension_numbers = #tpu.dot_dimension_numbers<[1], [1], [0], [0], [0, 0, 1, 0], [], []>} : vector<8x32xf32>, vector<32x32xf32>, vector<8x32xf32> -> vector<8x32xf32>
    %47 = arith.addf %41, %46 : vector<8x32xf32>
    %c0_59 = arith.constant 0 : index
    %c2_60 = arith.constant 2 : index
    %c0_61 = arith.constant 0 : index
    %c0_62 = arith.constant 0 : index
    %48 = vector.load %arg10[%c0_59, %c2_60, %c0_61, %c0_62] : memref<2x6x6x32xf32, #tpu.memory_space<vmem>>, vector<2x4x4x32xf32>
    %49 = vector.shape_cast %48 : vector<2x4x4x32xf32> to vector<32x32xf32>
    %c6 = arith.constant 6 : index
    %c0_63 = arith.constant 0 : index
    %c0_64 = arith.constant 0 : index
    %50 = vector.load %arg4[%c6, %c0_63, %c0_64] : memref<9x8x32xf32, #tpu.memory_space<vmem>>, vector<1x8x32xf32>
    %51 = vector.shape_cast %50 : vector<1x8x32xf32> to vector<8x32xf32>
    %cst_65 = arith.constant dense<0.000000e+00> : vector<8x32xf32>
    %52 = tpu.matmul %51, %49, %cst_65 {dimension_numbers = #tpu.dot_dimension_numbers<[1], [1], [0], [0], [0, 0, 1, 0], [], []>} : vector<8x32xf32>, vector<32x32xf32>, vector<8x32xf32> -> vector<8x32xf32>
    %53 = arith.addf %47, %52 : vector<8x32xf32>
    %c0_66 = arith.constant 0 : index
    %c2_67 = arith.constant 2 : index
    %c1_68 = arith.constant 1 : index
    %c0_69 = arith.constant 0 : index
    %54 = vector.load %arg10[%c0_66, %c2_67, %c1_68, %c0_69] : memref<2x6x6x32xf32, #tpu.memory_space<vmem>>, vector<2x4x4x32xf32>
    %55 = vector.shape_cast %54 : vector<2x4x4x32xf32> to vector<32x32xf32>
    %c7 = arith.constant 7 : index
    %c0_70 = arith.constant 0 : index
    %c0_71 = arith.constant 0 : index
    %56 = vector.load %arg4[%c7, %c0_70, %c0_71] : memref<9x8x32xf32, #tpu.memory_space<vmem>>, vector<1x8x32xf32>
    %57 = vector.shape_cast %56 : vector<1x8x32xf32> to vector<8x32xf32>
    %cst_72 = arith.constant dense<0.000000e+00> : vector<8x32xf32>
    %58 = tpu.matmul %57, %55, %cst_72 {dimension_numbers = #tpu.dot_dimension_numbers<[1], [1], [0], [0], [0, 0, 1, 0], [], []>} : vector<8x32xf32>, vector<32x32xf32>, vector<8x32xf32> -> vector<8x32xf32>
    %59 = arith.addf %53, %58 : vector<8x32xf32>
    %c0_73 = arith.constant 0 : index
    %c2_74 = arith.constant 2 : index
    %c2_75 = arith.constant 2 : index
    %c0_76 = arith.constant 0 : index
    %60 = vector.load %arg10[%c0_73, %c2_74, %c2_75, %c0_76] : memref<2x6x6x32xf32, #tpu.memory_space<vmem>>, vector<2x4x4x32xf32>
    %61 = vector.shape_cast %60 : vector<2x4x4x32xf32> to vector<32x32xf32>
    %c8 = arith.constant 8 : index
    %c0_77 = arith.constant 0 : index
    %c0_78 = arith.constant 0 : index
    %62 = vector.load %arg4[%c8, %c0_77, %c0_78] : memref<9x8x32xf32, #tpu.memory_space<vmem>>, vector<1x8x32xf32>
    %63 = vector.shape_cast %62 : vector<1x8x32xf32> to vector<8x32xf32>
    %cst_79 = arith.constant dense<0.000000e+00> : vector<8x32xf32>
    %64 = tpu.matmul %63, %61, %cst_79 {dimension_numbers = #tpu.dot_dimension_numbers<[1], [1], [0], [0], [0, 0, 1, 0], [], []>} : vector<8x32xf32>, vector<32x32xf32>, vector<8x32xf32> -> vector<8x32xf32>
    %65 = arith.addf %59, %64 : vector<8x32xf32>
    %c0_80 = arith.constant 0 : index
    %c0_81 = arith.constant 0 : index
    %66 = vector.load %arg5[%c0_80, %c0_81] : memref<8x1xf32, #tpu.memory_space<vmem>>, vector<8x1xf32>
    %67 = vector.broadcast %66 : vector<8x1xf32> to vector<8x32xf32>
    %68 = arith.addf %65, %67 : vector<8x32xf32>
    %cst_82 = arith.constant 0.000000e+00 : f32
    %69 = vector.broadcast %cst_82 : f32 to vector<8x32xf32>
    %70 = arith.maximumf %68, %69 : vector<8x32xf32>
    %c0_83 = arith.constant 0 : index
    %c0_84 = arith.constant 0 : index
    %71 = vector.load %arg8[%c0_83, %c0_84] : memref<16x256xf32, #tpu.memory_space<vmem>>, vector<16x256xf32>
    %c0_85 = arith.constant 0 : index
    %c0_86 = arith.constant 0 : index
    %72 = vector.load %arg6[%c0_85, %c0_86] : memref<21x8xf32, #tpu.memory_space<vmem>>, vector<21x8xf32>
    %c0_87 = arith.constant 0 : index
    %c0_88 = arith.constant 0 : index
    %73 = vector.load %arg7[%c0_87, %c0_88] : memref<21x1xf32, #tpu.memory_space<vmem>>, vector<21x1xf32>
    %74 = vector.extract_strided_slice %70 {offsets = [0, 0], sizes = [8, 16], strides = [1, 1]} : vector<8x32xf32> to vector<8x16xf32>
    %cst_89 = arith.constant dense<0.000000e+00> : vector<8x256xf32>
    %75 = tpu.matmul %74, %71, %cst_89 {dimension_numbers = #tpu.dot_dimension_numbers<[1], [0], [0], [1], [0, 0, 1, 1], [], []>} : vector<8x16xf32>, vector<16x256xf32>, vector<8x256xf32> -> vector<8x256xf32>
    %cst_90 = arith.constant dense<0.000000e+00> : vector<21x256xf32>
    %76 = tpu.matmul %72, %75, %cst_90 {dimension_numbers = #tpu.dot_dimension_numbers<[1], [0], [0], [1], [0, 0, 1, 1], [], []>} : vector<21x8xf32>, vector<8x256xf32>, vector<21x256xf32> -> vector<21x256xf32>
    %77 = vector.broadcast %73 : vector<21x1xf32> to vector<21x256xf32>
    %78 = arith.addf %76, %77 : vector<21x256xf32>
    %c0_91 = arith.constant 0 : index
    %c0_92 = arith.constant 0 : index
    %c0_93 = arith.constant 0 : index
    %79 = vector.load %arg9[%c0_91, %c0_92, %c0_93] : memref<2x21x256xf32, #tpu.memory_space<vmem>>, vector<1x21x256xf32>
    %80 = vector.shape_cast %79 : vector<1x21x256xf32> to vector<21x256xf32>
    %81 = vector.shape_cast %78 : vector<21x256xf32> to vector<1x21x256xf32>
    tpu.vector_store %arg9[%c0_91, %c0_92, %c0_93], %81 {strides = array<i32>} : memref<2x21x256xf32, #tpu.memory_space<vmem>>, vector<1x21x256xf32>,
    %82 = vector.extract_strided_slice %70 {offsets = [0, 16], sizes = [8, 16], strides = [1, 1]} : vector<8x32xf32> to vector<8x16xf32>
    %cst_94 = arith.constant dense<0.000000e+00> : vector<8x256xf32>
    %83 = tpu.matmul %82, %71, %cst_94 {dimension_numbers = #tpu.dot_dimension_numbers<[1], [0], [0], [1], [0, 0, 1, 1], [], []>} : vector<8x16xf32>, vector<16x256xf32>, vector<8x256xf32> -> vector<8x256xf32>
    %cst_95 = arith.constant dense<0.000000e+00> : vector<21x256xf32>
    %84 = tpu.matmul %72, %83, %cst_95 {dimension_numbers = #tpu.dot_dimension_numbers<[1], [0], [0], [1], [0, 0, 1, 1], [], []>} : vector<21x8xf32>, vector<8x256xf32>, vector<21x256xf32> -> vector<21x256xf32>
    %85 = vector.broadcast %73 : vector<21x1xf32> to vector<21x256xf32>
    %86 = arith.addf %84, %85 : vector<21x256xf32>
    %c1_96 = arith.constant 1 : index
    %c0_97 = arith.constant 0 : index
    %c0_98 = arith.constant 0 : index
    %87 = vector.load %arg9[%c1_96, %c0_97, %c0_98] : memref<2x21x256xf32, #tpu.memory_space<vmem>>, vector<1x21x256xf32>
    %88 = vector.shape_cast %87 : vector<1x21x256xf32> to vector<21x256xf32>
    %89 = vector.shape_cast %86 : vector<21x256xf32> to vector<1x21x256xf32>
    tpu.vector_store %arg9[%c1_96, %c0_97, %c0_98], %89 {strides = array<i32>} : memref<2x21x256xf32, #tpu.memory_space<vmem>>, vector<1x21x256xf32>,
    return
  }
  func.func @transform_0(%arg0: i32) -> (i32, i32, i32) {
    %c0_i32 = arith.constant 0 : i32
    %c0_i32_0 = arith.constant 0 : i32
    %c0_i32_1 = arith.constant 0 : i32
    %c0_i32_2 = arith.constant 0 : i32
    return %c0_i32, %c0_i32_0, %c0_i32_1 : i32, i32, i32
  }
  func.func @transform_1(%arg0: i32) -> (i32, i32) {
    %c0_i32 = arith.constant 0 : i32
    %c0_i32_0 = arith.constant 0 : i32
    %c0_i32_1 = arith.constant 0 : i32
    return %c0_i32, %c0_i32_0 : i32, i32
  }
  func.func @transform_2(%arg0: i32) -> (i32, i32) {
    %c0_i32 = arith.constant 0 : i32
    %c0_i32_0 = arith.constant 0 : i32
    %c0_i32_1 = arith.constant 0 : i32
    return %c0_i32, %c0_i32_0 : i32, i32
  }
  func.func @transform_3(%arg0: i32) -> (i32, i32, i32) {
    %c0_i32 = arith.constant 0 : i32
    %c0_i32_0 = arith.constant 0 : i32
    %c0_i32_1 = arith.constant 0 : i32
    %c0_i32_2 = arith.constant 0 : i32
    return %c0_i32, %c0_i32_0, %c0_i32_1 : i32, i32, i32
  }
  func.func @transform_4(%arg0: i32) -> (i32, i32) {
    %c0_i32 = arith.constant 0 : i32
    %c0_i32_0 = arith.constant 0 : i32
    %c0_i32_1 = arith.constant 0 : i32
    return %c0_i32, %c0_i32_0 : i32, i32
  }
  func.func @transform_5(%arg0: i32) -> (i32, i32) {
    %c0_i32 = arith.constant 0 : i32
    %c0_i32_0 = arith.constant 0 : i32
    %c0_i32_1 = arith.constant 0 : i32
    return %c0_i32, %c0_i32_0 : i32, i32
  }
  func.func @transform_6(%arg0: i32) -> (i32, i32) {
    %c0_i32 = arith.constant 0 : i32
    %c0_i32_0 = arith.constant 0 : i32
    %c0_i32_1 = arith.constant 0 : i32
    return %c0_i32, %c0_i32_0 : i32, i32
  }
  func.func @transform_7(%arg0: i32) -> (i32, i32) {
    %c0_i32 = arith.constant 0 : i32
    %c0_i32_0 = arith.constant 0 : i32
    %c0_i32_1 = arith.constant 0 : i32
    return %c0_i32, %c0_i32_0 : i32, i32
  }
  func.func @transform_8(%arg0: i32) -> (i32, i32, i32) {
    %c0_i32 = arith.constant 0 : i32
    %c0_i32_0 = arith.constant 0 : i32
    %c0_i32_1 = arith.constant 0 : i32
    %c0_i32_2 = arith.constant 0 : i32
    return %c0_i32, %c0_i32_0, %c0_i32_1 : i32, i32, i32
  }
}

</mosaic_0001>

<llo_original>
// kernel: tpu_custom_call.1
$region0: #{tpu_custom_call.1}
  #allocation0 [shape = 'u32[]', space=smem, size = 0x4, offset = 0x4, fixed_abs, tag = 'smem constant byte address 0x4 - core index']
  #allocation1 [shape = 'u32[144,128]{1,0:T(1,128)}', space=vmem, size = 0x12000, scoped, tag = 'internal scratch']
  #allocation2 [shape = 'f32[2,6,6,32]{3,2,1,0:T(8,128)}', space=vmem, size = 0xc000, scoped, tag = 'scratch operand']
  %s0 = inlined_call_operand.vmem [shape: f32[2,16,3], index: 0, kind: input, shape index: {}]
  %s1 = inlined_call_operand.vmem [shape: f32[3,32], index: 1, kind: input, shape index: {}]
  %s2 = inlined_call_operand.vmem [shape: f32[1,32], index: 2, kind: input, shape index: {}]
  %s3 = inlined_call_operand.vmem [shape: f32[9,8,32], index: 3, kind: input, shape index: {}]
  %s4 = inlined_call_operand.vmem [shape: f32[8,1], index: 4, kind: input, shape index: {}]
  %s5 = inlined_call_operand.vmem [shape: f32[21,8], index: 5, kind: input, shape index: {}]
  %s6 = inlined_call_operand.vmem [shape: f32[21,1], index: 6, kind: input, shape index: {}]
  %s7 = inlined_call_operand.vmem [shape: f32[16,256], index: 7, kind: input, shape index: {}]
  %s8 = inlined_call_operand.vmem [shape: f32[2,21,256], index: 8, kind: output, shape index: {}]
  %s9 = sld [smem:[#allocation0]]
  $region42: #{tpu_custom_call.1} parent=0
    _
  %s11 = ssub.s32 1, %s9
  %s12 = scalar_select 0, %s11, %s9
  // Predicated region
  $region2: #{tpu_custom_call.1} parent=0 // pred_check
    _
  $region3: #{tpu_custom_call.1} parent=0 // pred_check_branch
    %14 = sbr.rel (0) target = $region5
  $region4: #{tpu_custom_call.1} parent=0 // pred_region
    _
  $region5: #{tpu_custom_call.1} parent=0 // pred_fallthru
    _
  // Predicated region
  $region6: #{tpu_custom_call.1} parent=0 // pred_check
    _
  $region7: #{tpu_custom_call.1} parent=0 // pred_check_branch
    %16 = sbr.rel (0) target = $region9
  $region8: #{tpu_custom_call.1} parent=0 // pred_region
    _
  $region9: #{tpu_custom_call.1} parent=0 // pred_fallthru
    _
  // Predicated region
  $region10: #{tpu_custom_call.1} parent=0 // pred_check
    _
  $region11: #{tpu_custom_call.1} parent=0 // pred_check_branch
    %18 = sbr.rel (0) target = $region13
  $region12: #{tpu_custom_call.1} parent=0 // pred_region
    _
  $region13: #{tpu_custom_call.1} parent=0 // pred_fallthru
    _
  // Predicated region
  $region14: #{tpu_custom_call.1} parent=0 // pred_check
    _
  $region15: #{tpu_custom_call.1} parent=0 // pred_check_branch
    %20 = sbr.rel (0) target = $region17
  $region16: #{tpu_custom_call.1} parent=0 // pred_region
    _
  $region17: #{tpu_custom_call.1} parent=0 // pred_fallthru
    _
  // Predicated region
  $region18: #{tpu_custom_call.1} parent=0 // pred_check
    _
  $region19: #{tpu_custom_call.1} parent=0 // pred_check_branch
    %22 = sbr.rel (0) target = $region21
  $region20: #{tpu_custom_call.1} parent=0 // pred_region
    _
  $region21: #{tpu_custom_call.1} parent=0 // pred_fallthru
    _
  // Predicated region
  $region22: #{tpu_custom_call.1} parent=0 // pred_check
    _
  $region23: #{tpu_custom_call.1} parent=0 // pred_check_branch
    %24 = sbr.rel (0) target = $region25
  $region24: #{tpu_custom_call.1} parent=0 // pred_region
    _
  $region25: #{tpu_custom_call.1} parent=0 // pred_fallthru
    _
  // Predicated region
  $region26: #{tpu_custom_call.1} parent=0 // pred_check
    _
  $region27: #{tpu_custom_call.1} parent=0 // pred_check_branch
    %26 = sbr.rel (0) target = $region29
  $region28: #{tpu_custom_call.1} parent=0 // pred_region
    _
  $region29: #{tpu_custom_call.1} parent=0 // pred_fallthru
    _
  // Predicated region
  $region30: #{tpu_custom_call.1} parent=0 // pred_check
    _
  $region31: #{tpu_custom_call.1} parent=0 // pred_check_branch
    %28 = sbr.rel (0) target = $region33
  $region32: #{tpu_custom_call.1} parent=0 // pred_region
    _
  $region33: #{tpu_custom_call.1} parent=0 // pred_fallthru
    _
  %v29 = vld [vmem:[%s0] sm:$0xff]
  %v30 = vld [vmem:[%s0 + $0x8] sm:$0xff]
  %v31 = vld [vmem:[%s0 + $0x10] sm:$0xff]
  %v32 = vld [vmem:[%s0 + $0x18] sm:$0xff]
  %v33 = vld [vmem:[%s1] sm:$0x7]
  %v34 = vld [vmem:[%s2] sm:$0x1]
  %v36 = vlaneseq
  %v37 = vshrl.u32 %v36, 7
  %v38 = vsub.s32 0, %v37
  %v39 = vrot.slane %v34, %v38
  %vm41 = vcmask 23552
  %v43 = vsel %vm41, %v29, 0
  %v46 = vsel %vm41, %v30, 0
  %v49 = vsel %vm41, %v31, 0
  %v52 = vsel %vm41, %v32, 0
  %vm54 = vcmask 1042432
  %v56 = vsel %vm54, %v33, 0
  %58 = vmatprep.subr.mxu0 0.0
  %59 = vmatpush1.msra.mxu0 %v56
  %60 = vmatprep.subr.mxu0 0.0
  %61 = vmatpush1.msra.mxu0 0.0
  %62 = vmatprep.subr.mxu0 0.0
  %63 = vmatpush1.msra.mxu0 0.0
  %64 = vmatprep.subr.mxu0 0.0
  %65 = vmatpush1.msra.mxu0 0.0
  %66 = vmatprep.subr.mxu0 0.0
  %67 = vmatpush1.msra.mxu0 0.0
  %68 = vmatprep.subr.mxu0 0.0
  %69 = vmatpush1.msra.mxu0 0.0
  %70 = vmatprep.subr.mxu0 0.0
  %71 = vmatpush1.msra.mxu0 0.0
  %72 = vmatprep.subr.mxu0 0.0
  %73 = vmatpush1.msra.mxu0 0.0
  %74 = vmatprep.subr.mxu0 0.0
  %75 = vmatpush1.msra.mxu0 0.0
  %76 = vmatprep.subr.mxu0 0.0
  %77 = vmatpush1.msra.mxu0 0.0
  %78 = vmatprep.subr.mxu0 0.0
  %79 = vmatpush1.msra.mxu0 0.0
  %80 = vmatprep.subr.mxu0 0.0
  %81 = vmatpush1.msra.mxu0 0.0
  %82 = vmatprep.subr.mxu0 0.0
  %83 = vmatpush1.msra.mxu0 0.0
  %84 = vmatprep.subr.mxu0 0.0
  %85 = vmatpush1.msra.mxu0 0.0
  %86 = vmatprep.subr.mxu0 0.0
  %87 = vmatpush1.msra.mxu0 0.0
  %88 = vmatprep.subr.mxu0 0.0
  %89 = vmatpush1.msra.mxu0 0.0
  %90 = vmatprep.subr.mxu0 0.0
  %91 = vmatpush1.msra.mxu0 0.0
  %92 = vmatprep.subr.mxu0 0.0
  %93 = vmatpush1.msra.mxu0 0.0
  %94 = vmatprep.subr.mxu0 0.0
  %95 = vmatpush1.msra.mxu0 0.0
  %96 = vmatprep.subr.mxu0 0.0
  %97 = vmatpush1.msra.mxu0 0.0
  %98 = vmatprep.subr.mxu0 0.0
  %99 = vmatpush1.msra.mxu0 0.0
  %100 = vmatprep.subr.mxu0 0.0
  %101 = vmatpush1.msra.mxu0 0.0
  %102 = vmatprep.subr.mxu0 0.0
  %103 = vmatpush1.msra.mxu0 0.0
  %104 = vmatprep.subr.mxu0 0.0
  %105 = vmatpush1.msra.mxu0 0.0
  %106 = vmatprep.subr.mxu0 0.0
  %107 = vmatpush1.msra.mxu0 0.0
  %108 = vmatprep.subr.mxu0 0.0
  %109 = vmatpush1.msra.mxu0 0.0
  %110 = vmatprep.subr.mxu0 0.0
  %111 = vmatpush1.msra.mxu0 0.0
  %112 = vmatprep.subr.mxu0 0.0
  %113 = vmatpush1.msra.mxu0 0.0
  %114 = vmatprep.subr.mxu0 0.0
  %115 = vmatpush1.msra.mxu0 0.0
  %116 = vmatprep.subr.mxu0 0.0
  %117 = vmatpush1.msra.mxu0 0.0
  %118 = vmatprep.subr.mxu0 0.0
  %119 = vmatpush1.msra.mxu0 0.0
  %120 = vmatprep.subr.mxu0 0.0
  %121 = vmatpush1.msra.mxu0 0.0
  %122 = vmatprep.mubr.f32.mxu0 0.0
  %123 = vmatmul.mubr.f32.gmra.mrb[0].mxu0 %v43
  %v124 = vpop.f32.mrb[0].mxu0
  %v125 = vadd.f32 %v39, %v124
  %v126 = vpop.f32.mrb[0].mxu0
  %127 = vmatprep.mubr.f32.mxu0 0.0
  %128 = vmatmul.mubr.f32.gmra.mrb[0].mxu0 %v46
  %v129 = vpop.f32.mrb[0].mxu0
  %v130 = vadd.f32 %v39, %v129
  %v131 = vpop.f32.mrb[0].mxu0
  %132 = vmatprep.mubr.f32.mxu0 0.0
  %133 = vmatmul.mubr.f32.gmra.mrb[0].mxu0 %v49
  %v134 = vpop.f32.mrb[0].mxu0
  %v135 = vadd.f32 %v39, %v134
  %v136 = vpop.f32.mrb[0].mxu0
  %137 = vmatprep.mubr.f32.mxu0 0.0
  %138 = vmatmul.mubr.f32.gmra.mrb[0].mxu0 %v52
  %v139 = vpop.f32.mrb[0].mxu0
  %v140 = vadd.f32 %v39, %v139
  %v141 = vpop.f32.mrb[0].mxu0
  %142 = vdwg.mxu0
  %v143 = vmax.f32 %v125, 0.0
  %v144 = vmax.f32 %v130, 0.0
  %v145 = vmax.f32 %v135, 0.0
  %v146 = vmax.f32 %v140, 0.0
  %vm147 = vcmask 259072
  %148 = vst.msk [vmem:[#allocation2] sm:$0x3f] %vm147, 0.0
  %149 = vst.msk [vmem:[#allocation2 + $0x8] sm:$0x3f] %vm147, 0.0
  %150 = vst.msk [vmem:[#allocation2 + $0x10] sm:$0x3f] %vm147, 0.0
  %151 = vst.msk [vmem:[#allocation2 + $0x18] sm:$0x3f] %vm147, 0.0
  %152 = vst.msk [vmem:[#allocation2 + $0x20] sm:$0x3f] %vm147, 0.0
  %153 = vst.msk [vmem:[#allocation2 + $0x28] sm:$0x3f] %vm147, 0.0
  %154 = vst.msk [vmem:[#allocation2 + $0x30] sm:$0x3f] %vm147, 0.0
  %155 = vst.msk [vmem:[#allocation2 + $0x38] sm:$0x3f] %vm147, 0.0
  %156 = vst.msk [vmem:[#allocation2 + $0x40] sm:$0x3f] %vm147, 0.0
  %157 = vst.msk [vmem:[#allocation2 + $0x48] sm:$0x3f] %vm147, 0.0
  %158 = vst.msk [vmem:[#allocation2 + $0x50] sm:$0x3f] %vm147, 0.0
  %159 = vst.msk [vmem:[#allocation2 + $0x58] sm:$0x3f] %vm147, 0.0
  %v164 = vcombine.high %v143, %v143
  %v165 = vcombine.high %v144, %v144
  %v166 = vcombine.high %v145, %v145
  %v167 = vcombine.high %v146, %v146
  %s172 = scalar_lea.vmem [#allocation2], 8
  %vm173 = vcmask 257024
  %174 = vst.msk [vmem:[%s172 + $0x1] sm:$0xf] %vm173, %v143
  %175 = vst.msk [vmem:[%s172 + $0x9] sm:$0xf] %vm173, %v164
  %176 = vst.msk [vmem:[%s172 + $0x11] sm:$0xf] %vm173, %v144
  %177 = vst.msk [vmem:[%s172 + $0x19] sm:$0xf] %vm173, %v165
  %178 = vst.msk [vmem:[%s172 + $0x31] sm:$0xf] %vm173, %v145
  %179 = vst.msk [vmem:[%s172 + $0x39] sm:$0xf] %vm173, %v166
  %180 = vst.msk [vmem:[%s172 + $0x41] sm:$0xf] %vm173, %v146
  %181 = vst.msk [vmem:[%s172 + $0x49] sm:$0xf] %vm173, %v167
  %v182 = vld [vmem:[#allocation2] sm:$0xf]
  %v183 = vld [vmem:[#allocation2 + $0x8] sm:$0xf]
  %v184 = vld [vmem:[#allocation2 + $0x10] sm:$0xf]
  %v185 = vld [vmem:[#allocation2 + $0x18] sm:$0xf]
  %v186 = vld [vmem:[#allocation2 + $0x30] sm:$0xf]
  %v187 = vld [vmem:[#allocation2 + $0x38] sm:$0xf]
  %v188 = vld [vmem:[#allocation2 + $0x40] sm:$0xf]
  %v189 = vld [vmem:[#allocation2 + $0x48] sm:$0xf]
  %v190 = vld [vmem:[%s3] sm:$0xff]
  %v191 = vld [vmem:[#allocation2 + $0x1] sm:$0xf]
  %v192 = vld [vmem:[#allocation2 + $0x9] sm:$0xf]
  %v193 = vld [vmem:[#allocation2 + $0x11] sm:$0xf]
  %v194 = vld [vmem:[#allocation2 + $0x19] sm:$0xf]
  %v195 = vld [vmem:[#allocation2 + $0x31] sm:$0xf]
  %v196 = vld [vmem:[#allocation2 + $0x39] sm:$0xf]
  %v197 = vld [vmem:[#allocation2 + $0x41] sm:$0xf]
  %v198 = vld [vmem:[#allocation2 + $0x49] sm:$0xf]
  %s199 = scalar_lea.vmem %s3, 8
  %v200 = vld [vmem:[%s199] sm:$0xff]
  %v209 = vcombine.low %v191, %v192
  %v210 = vcombine.low %v193, %v194
  %v211 = vcombine.low %v195, %v196
  %v212 = vcombine.low %v197, %v198
  %vm213 = vcmask 261120
  %v215 = vsel %vm213, %v200, 0
  %v217 = vsel %vm213, %v209, 0
  %v219 = vsel %vm213, %v210, 0
  %v221 = vsel %vm213, %v211, 0
  %v223 = vsel %vm213, %v212, 0
  %225 = vmatprep.subr.mxu0 0.0
  %226 = vmatpush1.xpose.msra.mxu0 %v217
  %227 = vmatprep.subr.mxu0 0.0
  %228 = vmatpush1.xpose.msra.mxu0 %v219
  %229 = vmatprep.subr.mxu0 0.0
  %230 = vmatpush1.xpose.msra.mxu0 %v221
  %231 = vmatprep.subr.mxu0 0.0
  %232 = vmatpush1.xpose.msra.mxu0 %v223
  %233 = vmatprep.subr.mxu0 0.0
  %234 = vmatpush1.xpose.msra.mxu0 0.0
  %235 = vmatprep.subr.mxu0 0.0
  %236 = vmatpush1.xpose.msra.mxu0 0.0
  %237 = vmatprep.subr.mxu0 0.0
  %238 = vmatpush1.xpose.msra.mxu0 0.0
  %239 = vmatprep.subr.mxu0 0.0
  %240 = vmatpush1.xpose.msra.mxu0 0.0
  %241 = vmatprep.subr.mxu0 0.0
  %242 = vmatpush1.xpose.msra.mxu0 0.0
  %243 = vmatprep.subr.mxu0 0.0
  %244 = vmatpush1.xpose.msra.mxu0 0.0
  %245 = vmatprep.subr.mxu0 0.0
  %246 = vmatpush1.xpose.msra.mxu0 0.0
  %247 = vmatprep.subr.mxu0 0.0
  %248 = vmatpush1.xpose.msra.mxu0 0.0
  %249 = vmatprep.subr.mxu0 0.0
  %250 = vmatpush1.xpose.msra.mxu0 0.0
  %251 = vmatprep.subr.mxu0 0.0
  %252 = vmatpush1.xpose.msra.mxu0 0.0
  %253 = vmatprep.subr.mxu0 0.0
  %254 = vmatpush1.xpose.msra.mxu0 0.0
  %255 = vmatprep.subr.mxu0 0.0
  %256 = vmatpush1.xpose.msra.mxu0 0.0
  %257 = vmatprep.subr.mxu0 0.0
  %258 = vmatpush1.xpose.msra.mxu0 0.0
  %259 = vmatprep.subr.mxu0 0.0
  %260 = vmatpush1.xpose.msra.mxu0 0.0
  %261 = vmatprep.subr.mxu0 0.0
  %262 = vmatpush1.xpose.msra.mxu0 0.0
  %263 = vmatprep.subr.mxu0 0.0
  %264 = vmatpush1.xpose.msra.mxu0 0.0
  %265 = vmatprep.subr.mxu0 0.0
  %266 = vmatpush1.xpose.msra.mxu0 0.0
  %267 = vmatprep.subr.mxu0 0.0
  %268 = vmatpush1.xpose.msra.mxu0 0.0
  %269 = vmatprep.subr.mxu0 0.0
  %270 = vmatpush1.xpose.msra.mxu0 0.0
  %271 = vmatprep.subr.mxu0 0.0
  %272 = vmatpush1.xpose.msra.mxu0 0.0
  %273 = vmatprep.subr.mxu0 0.0
  %274 = vmatpush1.xpose.msra.mxu0 0.0
  %275 = vmatprep.subr.mxu0 0.0
  %276 = vmatpush1.xpose.msra.mxu0 0.0
  %277 = vmatprep.subr.mxu0 0.0
  %278 = vmatpush1.xpose.msra.mxu0 0.0
  %279 = vmatprep.subr.mxu0 0.0
  %280 = vmatpush1.xpose.msra.mxu0 0.0
  %281 = vmatprep.subr.mxu0 0.0
  %282 = vmatpush1.xpose.msra.mxu0 0.0
  %283 = vmatprep.subr.mxu0 0.0
  %284 = vmatpush1.xpose.msra.mxu0 0.0
  %285 = vmatprep.subr.mxu0 0.0
  %286 = vmatpush1.xpose.msra.mxu0 0.0
  %287 = vmatprep.subr.mxu0 0.0
  %288 = vmatpush1.xpose.msra.mxu0 0.0
  %289 = vmatprep.mubr.f32.mxu0 0.0
  %290 = vmatmul.mubr.f32.gmra.mrb[0].mxu0 %v215
  %v291 = vpop.f32.mrb[0].mxu0
  %v292 = vadd.f32 0.0, %v291
  %v293 = vpop.f32.mrb[0].mxu0
  %294 = vdwg.mxu0
  %v303 = vcombine.low %v182, %v183
  %v304 = vcombine.low %v184, %v185
  %v305 = vcombine.low %v186, %v187
  %v306 = vcombine.low %v188, %v189
  %v308 = vsel %vm213, %v190, 0
  %v310 = vsel %vm213, %v303, 0
  %v312 = vsel %vm213, %v304, 0
  %v314 = vsel %vm213, %v305, 0
  %v316 = vsel %vm213, %v306, 0
  %318 = vmatprep.subr.mxu0 0.0
  %319 = vmatpush1.xpose.msra.mxu0 %v310
  %320 = vmatprep.subr.mxu0 0.0
  %321 = vmatpush1.xpose.msra.mxu0 %v312
  %322 = vmatprep.subr.mxu0 0.0
  %323 = vmatpush1.xpose.msra.mxu0 %v314
  %324 = vmatprep.subr.mxu0 0.0
  %325 = vmatpush1.xpose.msra.mxu0 %v316
  %326 = vmatprep.subr.mxu0 0.0
  %327 = vmatpush1.xpose.msra.mxu0 0.0
  %328 = vmatprep.subr.mxu0 0.0
  %329 = vmatpush1.xpose.msra.mxu0 0.0
  %330 = vmatprep.subr.mxu0 0.0
  %331 = vmatpush1.xpose.msra.mxu0 0.0
  %332 = vmatprep.subr.mxu0 0.0
  %333 = vmatpush1.xpose.msra.mxu0 0.0
  %334 = vmatprep.subr.mxu0 0.0
  %335 = vmatpush1.xpose.msra.mxu0 0.0
  %336 = vmatprep.subr.mxu0 0.0
  %337 = vmatpush1.xpose.msra.mxu0 0.0
  %338 = vmatprep.subr.mxu0 0.0
  %339 = vmatpush1.xpose.msra.mxu0 0.0
  %340 = vmatprep.subr.mxu0 0.0
  %341 = vmatpush1.xpose.msra.mxu0 0.0
  %342 = vmatprep.subr.mxu0 0.0
  %343 = vmatpush1.xpose.msra.mxu0 0.0
  %344 = vmatprep.subr.mxu0 0.0
  %345 = vmatpush1.xpose.msra.mxu0 0.0
  %346 = vmatprep.subr.mxu0 0.0
  %347 = vmatpush1.xpose.msra.mxu0 0.0
  %348 = vmatprep.subr.mxu0 0.0
  %349 = vmatpush1.xpose.msra.mxu0 0.0
  %350 = vmatprep.subr.mxu0 0.0
  %351 = vmatpush1.xpose.msra.mxu0 0.0
  %352 = vmatprep.subr.mxu0 0.0
  %353 = vmatpush1.xpose.msra.mxu0 0.0
  %354 = vmatprep.subr.mxu0 0.0
  %355 = vmatpush1.xpose.msra.mxu0 0.0
  %356 = vmatprep.subr.mxu0 0.0
  %357 = vmatpush1.xpose.msra.mxu0 0.0
  %358 = vmatprep.subr.mxu0 0.0
  %359 = vmatpush1.xpose.msra.mxu0 0.0
  %360 = vmatprep.subr.mxu0 0.0
  %361 = vmatpush1.xpose.msra.mxu0 0.0
  %362 = vmatprep.subr.mxu0 0.0
  %363 = vmatpush1.xpose.msra.mxu0 0.0
  %364 = vmatprep.subr.mxu0 0.0
  %365 = vmatpush1.xpose.msra.mxu0 0.0
  %366 = vmatprep.subr.mxu0 0.0
  %367 = vmatpush1.xpose.msra.mxu0 0.0
  %368 = vmatprep.subr.mxu0 0.0
  %369 = vmatpush1.xpose.msra.mxu0 0.0
  %370 = vmatprep.subr.mxu0 0.0
  %371 = vmatpush1.xpose.msra.mxu0 0.0
  %372 = vmatprep.subr.mxu0 0.0
  %373 = vmatpush1.xpose.msra.mxu0 0.0
  %374 = vmatprep.subr.mxu0 0.0
  %375 = vmatpush1.xpose.msra.mxu0 0.0
  %376 = vmatprep.subr.mxu0 0.0
  %377 = vmatpush1.xpose.msra.mxu0 0.0
  %378 = vmatprep.subr.mxu0 0.0
  %379 = vmatpush1.xpose.msra.mxu0 0.0
  %380 = vmatprep.subr.mxu0 0.0
  %381 = vmatpush1.xpose.msra.mxu0 0.0
  %382 = vmatprep.mubr.f32.mxu0 0.0
  %383 = vmatmul.mubr.f32.gmra.mrb[0].mxu0 %v308
  %v384 = vpop.f32.mrb[0].mxu0
  %v385 = vadd.f32 %v292, %v384
  %v386 = vpop.f32.mrb[0].mxu0
  %387 = vdwg.mxu0
  %v388 = vld [vmem:[#allocation2 + $0x2] sm:$0xf]
  %v389 = vld [vmem:[#allocation2 + $0xa] sm:$0xf]
  %v390 = vld [vmem:[#allocation2 + $0x12] sm:$0xf]
  %v391 = vld [vmem:[#allocation2 + $0x1a] sm:$0xf]
  %v392 = vld [vmem:[#allocation2 + $0x32] sm:$0xf]
  %v393 = vld [vmem:[#allocation2 + $0x3a] sm:$0xf]
  %v394 = vld [vmem:[#allocation2 + $0x42] sm:$0xf]
  %v395 = vld [vmem:[#allocation2 + $0x4a] sm:$0xf]
  %s396 = scalar_lea.vmem %s3, 16
  %v397 = vld [vmem:[%s396] sm:$0xff]
  %v406 = vcombine.low %v388, %v389
  %v407 = vcombine.low %v390, %v391
  %v408 = vcombine.low %v392, %v393
  %v409 = vcombine.low %v394, %v395
  %v411 = vsel %vm213, %v397, 0
  %v413 = vsel %vm213, %v406, 0
  %v415 = vsel %vm213, %v407, 0
  %v417 = vsel %vm213, %v408, 0
  %v419 = vsel %vm213, %v409, 0
  %421 = vmatprep.subr.mxu0 0.0
  %422 = vmatpush1.xpose.msra.mxu0 %v413
  %423 = vmatprep.subr.mxu0 0.0
  %424 = vmatpush1.xpose.msra.mxu0 %v415
  %425 = vmatprep.subr.mxu0 0.0
  %426 = vmatpush1.xpose.msra.mxu0 %v417
  %427 = vmatprep.subr.mxu0 0.0
  %428 = vmatpush1.xpose.msra.mxu0 %v419
  %429 = vmatprep.subr.mxu0 0.0
  %430 = vmatpush1.xpose.msra.mxu0 0.0
  %431 = vmatprep.subr.mxu0 0.0
  %432 = vmatpush1.xpose.msra.mxu0 0.0
  %433 = vmatprep.subr.mxu0 0.0
  %434 = vmatpush1.xpose.msra.mxu0 0.0
  %435 = vmatprep.subr.mxu0 0.0
  %436 = vmatpush1.xpose.msra.mxu0 0.0
  %437 = vmatprep.subr.mxu0 0.0
  %438 = vmatpush1.xpose.msra.mxu0 0.0
  %439 = vmatprep.subr.mxu0 0.0
  %440 = vmatpush1.xpose.msra.mxu0 0.0
  %441 = vmatprep.subr.mxu0 0.0
  %442 = vmatpush1.xpose.msra.mxu0 0.0
  %443 = vmatprep.subr.mxu0 0.0
  %444 = vmatpush1.xpose.msra.mxu0 0.0
  %445 = vmatprep.subr.mxu0 0.0
  %446 = vmatpush1.xpose.msra.mxu0 0.0
  %447 = vmatprep.subr.mxu0 0.0
  %448 = vmatpush1.xpose.msra.mxu0 0.0
  %449 = vmatprep.subr.mxu0 0.0
  %450 = vmatpush1.xpose.msra.mxu0 0.0
  %451 = vmatprep.subr.mxu0 0.0
  %452 = vmatpush1.xpose.msra.mxu0 0.0
  %453 = vmatprep.subr.mxu0 0.0
  %454 = vmatpush1.xpose.msra.mxu0 0.0
  %455 = vmatprep.subr.mxu0 0.0
  %456 = vmatpush1.xpose.msra.mxu0 0.0
  %457 = vmatprep.subr.mxu0 0.0
  %458 = vmatpush1.xpose.msra.mxu0 0.0
  %459 = vmatprep.subr.mxu0 0.0
  %460 = vmatpush1.xpose.msra.mxu0 0.0
  %461 = vmatprep.subr.mxu0 0.0
  %462 = vmatpush1.xpose.msra.mxu0 0.0
  %463 = vmatprep.subr.mxu0 0.0
  %464 = vmatpush1.xpose.msra.mxu0 0.0
  %465 = vmatprep.subr.mxu0 0.0
  %466 = vmatpush1.xpose.msra.mxu0 0.0
  %467 = vmatprep.subr.mxu0 0.0
  %468 = vmatpush1.xpose.msra.mxu0 0.0
  %469 = vmatprep.subr.mxu0 0.0
  %470 = vmatpush1.xpose.msra.mxu0 0.0
  %471 = vmatprep.subr.mxu0 0.0
  %472 = vmatpush1.xpose.msra.mxu0 0.0
  %473 = vmatprep.subr.mxu0 0.0
  %474 = vmatpush1.xpose.msra.mxu0 0.0
  %475 = vmatprep.subr.mxu0 0.0
  %476 = vmatpush1.xpose.msra.mxu0 0.0
  %477 = vmatprep.subr.mxu0 0.0
  %478 = vmatpush1.xpose.msra.mxu0 0.0
  %479 = vmatprep.subr.mxu0 0.0
  %480 = vmatpush1.xpose.msra.mxu0 0.0
  %481 = vmatprep.subr.mxu0 0.0
  %482 = vmatpush1.xpose.msra.mxu0 0.0
  %483 = vmatprep.subr.mxu0 0.0
  %484 = vmatpush1.xpose.msra.mxu0 0.0
  %485 = vmatprep.mubr.f32.mxu0 0.0
  %486 = vmatmul.mubr.f32.gmra.mrb[0].mxu0 %v411
  %v487 = vpop.f32.mrb[0].mxu0
  %v488 = vadd.f32 0.0, %v487
  %v489 = vpop.f32.mrb[0].mxu0
  %490 = vdwg.mxu0
  %v491 = vadd.f32 %v385, %v488
  %v492 = vld [vmem:[%s172] sm:$0xf]
  %v493 = vld [vmem:[%s172 + $0x8] sm:$0xf]
  %v494 = vld [vmem:[%s172 + $0x10] sm:$0xf]
  %v495 = vld [vmem:[%s172 + $0x18] sm:$0xf]
  %v496 = vld [vmem:[%s172 + $0x30] sm:$0xf]
  %v497 = vld [vmem:[%s172 + $0x38] sm:$0xf]
  %v498 = vld [vmem:[%s172 + $0x40] sm:$0xf]
  %v499 = vld [vmem:[%s172 + $0x48] sm:$0xf]
  %s500 = scalar_lea.vmem %s3, 24
  %v501 = vld [vmem:[%s500] sm:$0xff]
  %v510 = vcombine.low %v492, %v493
  %v511 = vcombine.low %v494, %v495
  %v512 = vcombine.low %v496, %v497
  %v513 = vcombine.low %v498, %v499
  %v515 = vsel %vm213, %v501, 0
  %v517 = vsel %vm213, %v510, 0
  %v519 = vsel %vm213, %v511, 0
  %v521 = vsel %vm213, %v512, 0
  %v523 = vsel %vm213, %v513, 0
  %525 = vmatprep.subr.mxu0 0.0
  %526 = vmatpush1.xpose.msra.mxu0 %v517
  %527 = vmatprep.subr.mxu0 0.0
  %528 = vmatpush1.xpose.msra.mxu0 %v519
  %529 = vmatprep.subr.mxu0 0.0
  %530 = vmatpush1.xpose.msra.mxu0 %v521
  %531 = vmatprep.subr.mxu0 0.0
  %532 = vmatpush1.xpose.msra.mxu0 %v523
  %533 = vmatprep.subr.mxu0 0.0
  %534 = vmatpush1.xpose.msra.mxu0 0.0
  %535 = vmatprep.subr.mxu0 0.0
  %536 = vmatpush1.xpose.msra.mxu0 0.0
  %537 = vmatprep.subr.mxu0 0.0
  %538 = vmatpush1.xpose.msra.mxu0 0.0
  %539 = vmatprep.subr.mxu0 0.0
  %540 = vmatpush1.xpose.msra.mxu0 0.0
  %541 = vmatprep.subr.mxu0 0.0
  %542 = vmatpush1.xpose.msra.mxu0 0.0
  %543 = vmatprep.subr.mxu0 0.0
  %544 = vmatpush1.xpose.msra.mxu0 0.0
  %545 = vmatprep.subr.mxu0 0.0
  %546 = vmatpush1.xpose.msra.mxu0 0.0
  %547 = vmatprep.subr.mxu0 0.0
  %548 = vmatpush1.xpose.msra.mxu0 0.0
  %549 = vmatprep.subr.mxu0 0.0
  %550 = vmatpush1.xpose.msra.mxu0 0.0
  %551 = vmatprep.subr.mxu0 0.0
  %552 = vmatpush1.xpose.msra.mxu0 0.0
  %553 = vmatprep.subr.mxu0 0.0
  %554 = vmatpush1.xpose.msra.mxu0 0.0
  %555 = vmatprep.subr.mxu0 0.0
  %556 = vmatpush1.xpose.msra.mxu0 0.0
  %557 = vmatprep.subr.mxu0 0.0
  %558 = vmatpush1.xpose.msra.mxu0 0.0
  %559 = vmatprep.subr.mxu0 0.0
  %560 = vmatpush1.xpose.msra.mxu0 0.0
  %561 = vmatprep.subr.mxu0 0.0
  %562 = vmatpush1.xpose.msra.mxu0 0.0
  %563 = vmatprep.subr.mxu0 0.0
  %564 = vmatpush1.xpose.msra.mxu0 0.0
  %565 = vmatprep.subr.mxu0 0.0
  %566 = vmatpush1.xpose.msra.mxu0 0.0
  %567 = vmatprep.subr.mxu0 0.0
  %568 = vmatpush1.xpose.msra.mxu0 0.0
  %569 = vmatprep.subr.mxu0 0.0
  %570 = vmatpush1.xpose.msra.mxu0 0.0
  %571 = vmatprep.subr.mxu0 0.0
  %572 = vmatpush1.xpose.msra.mxu0 0.0
  %573 = vmatprep.subr.mxu0 0.0
  %574 = vmatpush1.xpose.msra.mxu0 0.0
  %575 = vmatprep.subr.mxu0 0.0
  %576 = vmatpush1.xpose.msra.mxu0 0.0
  %577 = vmatprep.subr.mxu0 0.0
  %578 = vmatpush1.xpose.msra.mxu0 0.0
  %579 = vmatprep.subr.mxu0 0.0
  %580 = vmatpush1.xpose.msra.mxu0 0.0
  %581 = vmatprep.subr.mxu0 0.0
  %582 = vmatpush1.xpose.msra.mxu0 0.0
  %583 = vmatprep.subr.mxu0 0.0
  %584 = vmatpush1.xpose.msra.mxu0 0.0
  %585 = vmatprep.subr.mxu0 0.0
  %586 = vmatpush1.xpose.msra.mxu0 0.0
  %587 = vmatprep.subr.mxu0 0.0
  %588 = vmatpush1.xpose.msra.mxu0 0.0
  %589 = vmatprep.mubr.f32.mxu0 0.0
  %590 = vmatmul.mubr.f32.gmra.mrb[0].mxu0 %v515
  %v591 = vpop.f32.mrb[0].mxu0
  %v592 = vadd.f32 0.0, %v591
  %v593 = vpop.f32.mrb[0].mxu0
  %594 = vdwg.mxu0
  %v595 = vadd.f32 %v491, %v592
  %v596 = vld [vmem:[%s172 + $0x1] sm:$0xf]
  %v597 = vld [vmem:[%s172 + $0x9] sm:$0xf]
  %v598 = vld [vmem:[%s172 + $0x11] sm:$0xf]
  %v599 = vld [vmem:[%s172 + $0x19] sm:$0xf]
  %v600 = vld [vmem:[%s172 + $0x31] sm:$0xf]
  %v601 = vld [vmem:[%s172 + $0x39] sm:$0xf]
  %v602 = vld [vmem:[%s172 + $0x41] sm:$0xf]
  %v603 = vld [vmem:[%s172 + $0x49] sm:$0xf]
  %s604 = scalar_lea.vmem %s3, 32
  %v605 = vld [vmem:[%s604] sm:$0xff]
  %v614 = vcombine.low %v596, %v597
  %v615 = vcombine.low %v598, %v599
  %v616 = vcombine.low %v600, %v601
  %v617 = vcombine.low %v602, %v603
  %v619 = vsel %vm213, %v605, 0
  %v621 = vsel %vm213, %v614, 0
  %v623 = vsel %vm213, %v615, 0
  %v625 = vsel %vm213, %v616, 0
  %v627 = vsel %vm213, %v617, 0
  %629 = vmatprep.subr.mxu0 0.0
  %630 = vmatpush1.xpose.msra.mxu0 %v621
  %631 = vmatprep.subr.mxu0 0.0
  %632 = vmatpush1.xpose.msra.mxu0 %v623
  %633 = vmatprep.subr.mxu0 0.0
  %634 = vmatpush1.xpose.msra.mxu0 %v625
  %635 = vmatprep.subr.mxu0 0.0
  %636 = vmatpush1.xpose.msra.mxu0 %v627
  %637 = vmatprep.subr.mxu0 0.0
  %638 = vmatpush1.xpose.msra.mxu0 0.0
  %639 = vmatprep.subr.mxu0 0.0
  %640 = vmatpush1.xpose.msra.mxu0 0.0
  %641 = vmatprep.subr.mxu0 0.0
  %642 = vmatpush1.xpose.msra.mxu0 0.0
  %643 = vmatprep.subr.mxu0 0.0
  %644 = vmatpush1.xpose.msra.mxu0 0.0
  %645 = vmatprep.subr.mxu0 0.0
  %646 = vmatpush1.xpose.msra.mxu0 0.0
  %647 = vmatprep.subr.mxu0 0.0
  %648 = vmatpush1.xpose.msra.mxu0 0.0
  %649 = vmatprep.subr.mxu0 0.0
  %650 = vmatpush1.xpose.msra.mxu0 0.0
  %651 = vmatprep.subr.mxu0 0.0
  %652 = vmatpush1.xpose.msra.mxu0 0.0
  %653 = vmatprep.subr.mxu0 0.0
  %654 = vmatpush1.xpose.msra.mxu0 0.0
  %655 = vmatprep.subr.mxu0 0.0
  %656 = vmatpush1.xpose.msra.mxu0 0.0
  %657 = vmatprep.subr.mxu0 0.0
  %658 = vmatpush1.xpose.msra.mxu0 0.0
  %659 = vmatprep.subr.mxu0 0.0
  %660 = vmatpush1.xpose.msra.mxu0 0.0
  %661 = vmatprep.subr.mxu0 0.0
  %662 = vmatpush1.xpose.msra.mxu0 0.0
  %663 = vmatprep.subr.mxu0 0.0
  %664 = vmatpush1.xpose.msra.mxu0 0.0
  %665 = vmatprep.subr.mxu0 0.0
  %666 = vmatpush1.xpose.msra.mxu0 0.0
  %667 = vmatprep.subr.mxu0 0.0
  %668 = vmatpush1.xpose.msra.mxu0 0.0
  %669 = vmatprep.subr.mxu0 0.0
  %670 = vmatpush1.xpose.msra.mxu0 0.0
  %671 = vmatprep.subr.mxu0 0.0
  %672 = vmatpush1.xpose.msra.mxu0 0.0
  %673 = vmatprep.subr.mxu0 0.0
  %674 = vmatpush1.xpose.msra.mxu0 0.0
  %675 = vmatprep.subr.mxu0 0.0
  %676 = vmatpush1.xpose.msra.mxu0 0.0
  %677 = vmatprep.subr.mxu0 0.0
  %678 = vmatpush1.xpose.msra.mxu0 0.0
  %679 = vmatprep.subr.mxu0 0.0
  %680 = vmatpush1.xpose.msra.mxu0 0.0
  %681 = vmatprep.subr.mxu0 0.0
  %682 = vmatpush1.xpose.msra.mxu0 0.0
  %683 = vmatprep.subr.mxu0 0.0
  %684 = vmatpush1.xpose.msra.mxu0 0.0
  %685 = vmatprep.subr.mxu0 0.0
  %686 = vmatpush1.xpose.msra.mxu0 0.0
  %687 = vmatprep.subr.mxu0 0.0
  %688 = vmatpush1.xpose.msra.mxu0 0.0
  %689 = vmatprep.subr.mxu0 0.0
  %690 = vmatpush1.xpose.msra.mxu0 0.0
  %691 = vmatprep.subr.mxu0 0.0
  %692 = vmatpush1.xpose.msra.mxu0 0.0
  %693 = vmatprep.mubr.f32.mxu0 0.0
  %694 = vmatmul.mubr.f32.gmra.mrb[0].mxu0 %v619
  %v695 = vpop.f32.mrb[0].mxu0
  %v696 = vadd.f32 0.0, %v695
  %v697 = vpop.f32.mrb[0].mxu0
  %698 = vdwg.mxu0
  %v699 = vadd.f32 %v595, %v696
  %v700 = vld [vmem:[%s172 + $0x2] sm:$0xf]
  %v701 = vld [vmem:[%s172 + $0xa] sm:$0xf]
  %v702 = vld [vmem:[%s172 + $0x12] sm:$0xf]
  %v703 = vld [vmem:[%s172 + $0x1a] sm:$0xf]
  %v704 = vld [vmem:[%s172 + $0x32] sm:$0xf]
  %v705 = vld [vmem:[%s172 + $0x3a] sm:$0xf]
  %v706 = vld [vmem:[%s172 + $0x42] sm:$0xf]
  %v707 = vld [vmem:[%s172 + $0x4a] sm:$0xf]
  %s708 = scalar_lea.vmem %s3, 40
  %v709 = vld [vmem:[%s708] sm:$0xff]
  %v718 = vcombine.low %v700, %v701
  %v719 = vcombine.low %v702, %v703
  %v720 = vcombine.low %v704, %v705
  %v721 = vcombine.low %v706, %v707
  %v723 = vsel %vm213, %v709, 0
  %v725 = vsel %vm213, %v718, 0
  %v727 = vsel %vm213, %v719, 0
  %v729 = vsel %vm213, %v720, 0
  %v731 = vsel %vm213, %v721, 0
  %733 = vmatprep.subr.mxu0 0.0
  %734 = vmatpush1.xpose.msra.mxu0 %v725
  %735 = vmatprep.subr.mxu0 0.0
  %736 = vmatpush1.xpose.msra.mxu0 %v727
  %737 = vmatprep.subr.mxu0 0.0
  %738 = vmatpush1.xpose.msra.mxu0 %v729
  %739 = vmatprep.subr.mxu0 0.0
  %740 = vmatpush1.xpose.msra.mxu0 %v731
  %741 = vmatprep.subr.mxu0 0.0
  %742 = vmatpush1.xpose.msra.mxu0 0.0
  %743 = vmatprep.subr.mxu0 0.0
  %744 = vmatpush1.xpose.msra.mxu0 0.0
  %745 = vmatprep.subr.mxu0 0.0
  %746 = vmatpush1.xpose.msra.mxu0 0.0
  %747 = vmatprep.subr.mxu0 0.0
  %748 = vmatpush1.xpose.msra.mxu0 0.0
  %749 = vmatprep.subr.mxu0 0.0
  %750 = vmatpush1.xpose.msra.mxu0 0.0
  %751 = vmatprep.subr.mxu0 0.0
  %752 = vmatpush1.xpose.msra.mxu0 0.0
  %753 = vmatprep.subr.mxu0 0.0
  %754 = vmatpush1.xpose.msra.mxu0 0.0
  %755 = vmatprep.subr.mxu0 0.0
  %756 = vmatpush1.xpose.msra.mxu0 0.0
  %757 = vmatprep.subr.mxu0 0.0
  %758 = vmatpush1.xpose.msra.mxu0 0.0
  %759 = vmatprep.subr.mxu0 0.0
  %760 = vmatpush1.xpose.msra.mxu0 0.0
  %761 = vmatprep.subr.mxu0 0.0
  %762 = vmatpush1.xpose.msra.mxu0 0.0
  %763 = vmatprep.subr.mxu0 0.0
  %764 = vmatpush1.xpose.msra.mxu0 0.0
  %765 = vmatprep.subr.mxu0 0.0
  %766 = vmatpush1.xpose.msra.mxu0 0.0
  %767 = vmatprep.subr.mxu0 0.0
  %768 = vmatpush1.xpose.msra.mxu0 0.0
  %769 = vmatprep.subr.mxu0 0.0
  %770 = vmatpush1.xpose.msra.mxu0 0.0
  %771 = vmatprep.subr.mxu0 0.0
  %772 = vmatpush1.xpose.msra.mxu0 0.0
  %773 = vmatprep.subr.mxu0 0.0
  %774 = vmatpush1.xpose.msra.mxu0 0.0
  %775 = vmatprep.subr.mxu0 0.0
  %776 = vmatpush1.xpose.msra.mxu0 0.0
  %777 = vmatprep.subr.mxu0 0.0
  %778 = vmatpush1.xpose.msra.mxu0 0.0
  %779 = vmatprep.subr.mxu0 0.0
  %780 = vmatpush1.xpose.msra.mxu0 0.0
  %781 = vmatprep.subr.mxu0 0.0
  %782 = vmatpush1.xpose.msra.mxu0 0.0
  %783 = vmatprep.subr.mxu0 0.0
  %784 = vmatpush1.xpose.msra.mxu0 0.0
  %785 = vmatprep.subr.mxu0 0.0
  %786 = vmatpush1.xpose.msra.mxu0 0.0
  %787 = vmatprep.subr.mxu0 0.0
  %788 = vmatpush1.xpose.msra.mxu0 0.0
  %789 = vmatprep.subr.mxu0 0.0
  %790 = vmatpush1.xpose.msra.mxu0 0.0
  %791 = vmatprep.subr.mxu0 0.0
  %792 = vmatpush1.xpose.msra.mxu0 0.0
  %793 = vmatprep.subr.mxu0 0.0
  %794 = vmatpush1.xpose.msra.mxu0 0.0
  %795 = vmatprep.subr.mxu0 0.0
  %796 = vmatpush1.xpose.msra.mxu0 0.0
  %797 = vmatprep.mubr.f32.mxu0 0.0
  %798 = vmatmul.mubr.f32.gmra.mrb[0].mxu0 %v723
  %v799 = vpop.f32.mrb[0].mxu0
  %v800 = vadd.f32 0.0, %v799
  %v801 = vpop.f32.mrb[0].mxu0
  %802 = vdwg.mxu0
  %v803 = vadd.f32 %v699, %v800
  %s804 = scalar_lea.vmem [#allocation2], 16
  %v805 = vld [vmem:[%s804] sm:$0xf]
  %v806 = vld [vmem:[%s804 + $0x8] sm:$0xf]
  %v807 = vld [vmem:[%s804 + $0x10] sm:$0xf]
  %v808 = vld [vmem:[%s804 + $0x18] sm:$0xf]
  %v809 = vld [vmem:[%s804 + $0x30] sm:$0xf]
  %v810 = vld [vmem:[%s804 + $0x38] sm:$0xf]
  %v811 = vld [vmem:[%s804 + $0x40] sm:$0xf]
  %v812 = vld [vmem:[%s804 + $0x48] sm:$0xf]
  %s813 = scalar_lea.vmem %s3, 48
  %v814 = vld [vmem:[%s813] sm:$0xff]
  %v823 = vcombine.low %v805, %v806
  %v824 = vcombine.low %v807, %v808
  %v825 = vcombine.low %v809, %v810
  %v826 = vcombine.low %v811, %v812
  %v828 = vsel %vm213, %v814, 0
  %v830 = vsel %vm213, %v823, 0
  %v832 = vsel %vm213, %v824, 0
  %v834 = vsel %vm213, %v825, 0
  %v836 = vsel %vm213, %v826, 0
  %838 = vmatprep.subr.mxu0 0.0
  %839 = vmatpush1.xpose.msra.mxu0 %v830
  %840 = vmatprep.subr.mxu0 0.0
  %841 = vmatpush1.xpose.msra.mxu0 %v832
  %842 = vmatprep.subr.mxu0 0.0
  %843 = vmatpush1.xpose.msra.mxu0 %v834
  %844 = vmatprep.subr.mxu0 0.0
  %845 = vmatpush1.xpose.msra.mxu0 %v836
  %846 = vmatprep.subr.mxu0 0.0
  %847 = vmatpush1.xpose.msra.mxu0 0.0
  %848 = vmatprep.subr.mxu0 0.0
  %849 = vmatpush1.xpose.msra.mxu0 0.0
  %850 = vmatprep.subr.mxu0 0.0
  %851 = vmatpush1.xpose.msra.mxu0 0.0
  %852 = vmatprep.subr.mxu0 0.0
  %853 = vmatpush1.xpose.msra.mxu0 0.0
  %854 = vmatprep.subr.mxu0 0.0
  %855 = vmatpush1.xpose.msra.mxu0 0.0
  %856 = vmatprep.subr.mxu0 0.0
  %857 = vmatpush1.xpose.msra.mxu0 0.0
  %858 = vmatprep.subr.mxu0 0.0
  %859 = vmatpush1.xpose.msra.mxu0 0.0
  %860 = vmatprep.subr.mxu0 0.0
  %861 = vmatpush1.xpose.msra.mxu0 0.0
  %862 = vmatprep.subr.mxu0 0.0
  %863 = vmatpush1.xpose.msra.mxu0 0.0
  %864 = vmatprep.subr.mxu0 0.0
  %865 = vmatpush1.xpose.msra.mxu0 0.0
  %866 = vmatprep.subr.mxu0 0.0
  %867 = vmatpush1.xpose.msra.mxu0 0.0
  %868 = vmatprep.subr.mxu0 0.0
  %869 = vmatpush1.xpose.msra.mxu0 0.0
  %870 = vmatprep.subr.mxu0 0.0
  %871 = vmatpush1.xpose.msra.mxu0 0.0
  %872 = vmatprep.subr.mxu0 0.0
  %873 = vmatpush1.xpose.msra.mxu0 0.0
  %874 = vmatprep.subr.mxu0 0.0
  %875 = vmatpush1.xpose.msra.mxu0 0.0
  %876 = vmatprep.subr.mxu0 0.0
  %877 = vmatpush1.xpose.msra.mxu0 0.0
  %878 = vmatprep.subr.mxu0 0.0
  %879 = vmatpush1.xpose.msra.mxu0 0.0
  %880 = vmatprep.subr.mxu0 0.0
  %881 = vmatpush1.xpose.msra.mxu0 0.0
  %882 = vmatprep.subr.mxu0 0.0
  %883 = vmatpush1.xpose.msra.mxu0 0.0
  %884 = vmatprep.subr.mxu0 0.0
  %885 = vmatpush1.xpose.msra.mxu0 0.0
  %886 = vmatprep.subr.mxu0 0.0
  %887 = vmatpush1.xpose.msra.mxu0 0.0
  %888 = vmatprep.subr.mxu0 0.0
  %889 = vmatpush1.xpose.msra.mxu0 0.0
  %890 = vmatprep.subr.mxu0 0.0
  %891 = vmatpush1.xpose.msra.mxu0 0.0
  %892 = vmatprep.subr.mxu0 0.0
  %893 = vmatpush1.xpose.msra.mxu0 0.0
  %894 = vmatprep.subr.mxu0 0.0
  %895 = vmatpush1.xpose.msra.mxu0 0.0
  %896 = vmatprep.subr.mxu0 0.0
  %897 = vmatpush1.xpose.msra.mxu0 0.0
  %898 = vmatprep.subr.mxu0 0.0
  %899 = vmatpush1.xpose.msra.mxu0 0.0
  %900 = vmatprep.subr.mxu0 0.0
  %901 = vmatpush1.xpose.msra.mxu0 0.0
  %902 = vmatprep.mubr.f32.mxu0 0.0
  %903 = vmatmul.mubr.f32.gmra.mrb[0].mxu0 %v828
  %v904 = vpop.f32.mrb[0].mxu0
  %v905 = vadd.f32 0.0, %v904
  %v906 = vpop.f32.mrb[0].mxu0
  %907 = vdwg.mxu0
  %v908 = vadd.f32 %v803, %v905
  %v909 = vld [vmem:[%s804 + $0x1] sm:$0xf]
  %v910 = vld [vmem:[%s804 + $0x9] sm:$0xf]
  %v911 = vld [vmem:[%s804 + $0x11] sm:$0xf]
  %v912 = vld [vmem:[%s804 + $0x19] sm:$0xf]
  %v913 = vld [vmem:[%s804 + $0x31] sm:$0xf]
  %v914 = vld [vmem:[%s804 + $0x39] sm:$0xf]
  %v915 = vld [vmem:[%s804 + $0x41] sm:$0xf]
  %v916 = vld [vmem:[%s804 + $0x49] sm:$0xf]
  %s917 = scalar_lea.vmem %s3, 56
  %v918 = vld [vmem:[%s917] sm:$0xff]
  %v927 = vcombine.low %v909, %v910
  %v928 = vcombine.low %v911, %v912
  %v929 = vcombine.low %v913, %v914
  %v930 = vcombine.low %v915, %v916
  %v932 = vsel %vm213, %v918, 0
  %v934 = vsel %vm213, %v927, 0
  %v936 = vsel %vm213, %v928, 0
  %v938 = vsel %vm213, %v929, 0
  %v940 = vsel %vm213, %v930, 0
  %942 = vmatprep.subr.mxu0 0.0
  %943 = vmatpush1.xpose.msra.mxu0 %v934
  %944 = vmatprep.subr.mxu0 0.0
  %945 = vmatpush1.xpose.msra.mxu0 %v936
  %946 = vmatprep.subr.mxu0 0.0
  %947 = vmatpush1.xpose.msra.mxu0 %v938
  %948 = vmatprep.subr.mxu0 0.0
  %949 = vmatpush1.xpose.msra.mxu0 %v940
  %950 = vmatprep.subr.mxu0 0.0
  %951 = vmatpush1.xpose.msra.mxu0 0.0
  %952 = vmatprep.subr.mxu0 0.0
  %953 = vmatpush1.xpose.msra.mxu0 0.0
  %954 = vmatprep.subr.mxu0 0.0
  %955 = vmatpush1.xpose.msra.mxu0 0.0
  %956 = vmatprep.subr.mxu0 0.0
  %957 = vmatpush1.xpose.msra.mxu0 0.0
  %958 = vmatprep.subr.mxu0 0.0
  %959 = vmatpush1.xpose.msra.mxu0 0.0
  %960 = vmatprep.subr.mxu0 0.0
  %961 = vmatpush1.xpose.msra.mxu0 0.0
  %962 = vmatprep.subr.mxu0 0.0
  %963 = vmatpush1.xpose.msra.mxu0 0.0
  %964 = vmatprep.subr.mxu0 0.0
  %965 = vmatpush1.xpose.msra.mxu0 0.0
  %966 = vmatprep.subr.mxu0 0.0
  %967 = vmatpush1.xpose.msra.mxu0 0.0
  %968 = vmatprep.subr.mxu0 0.0
  %969 = vmatpush1.xpose.msra.mxu0 0.0
  %970 = vmatprep.subr.mxu0 0.0
  %971 = vmatpush1.xpose.msra.mxu0 0.0
  %972 = vmatprep.subr.mxu0 0.0
  %973 = vmatpush1.xpose.msra.mxu0 0.0
  %974 = vmatprep.subr.mxu0 0.0
  %975 = vmatpush1.xpose.msra.mxu0 0.0
  %976 = vmatprep.subr.mxu0 0.0
  %977 = vmatpush1.xpose.msra.mxu0 0.0
  %978 = vmatprep.subr.mxu0 0.0
  %979 = vmatpush1.xpose.msra.mxu0 0.0
  %980 = vmatprep.subr.mxu0 0.0
  %981 = vmatpush1.xpose.msra.mxu0 0.0
  %982 = vmatprep.subr.mxu0 0.0
  %983 = vmatpush1.xpose.msra.mxu0 0.0
  %984 = vmatprep.subr.mxu0 0.0
  %985 = vmatpush1.xpose.msra.mxu0 0.0
  %986 = vmatprep.subr.mxu0 0.0
  %987 = vmatpush1.xpose.msra.mxu0 0.0
  %988 = vmatprep.subr.mxu0 0.0
  %989 = vmatpush1.xpose.msra.mxu0 0.0
  %990 = vmatprep.subr.mxu0 0.0
  %991 = vmatpush1.xpose.msra.mxu0 0.0
  %992 = vmatprep.subr.mxu0 0.0
  %993 = vmatpush1.xpose.msra.mxu0 0.0
  %994 = vmatprep.subr.mxu0 0.0
  %995 = vmatpush1.xpose.msra.mxu0 0.0
  %996 = vmatprep.subr.mxu0 0.0
  %997 = vmatpush1.xpose.msra.mxu0 0.0
  %998 = vmatprep.subr.mxu0 0.0
  %999 = vmatpush1.xpose.msra.mxu0 0.0
  %1000 = vmatprep.subr.mxu0 0.0
  %1001 = vmatpush1.xpose.msra.mxu0 0.0
  %1002 = vmatprep.subr.mxu0 0.0
  %1003 = vmatpush1.xpose.msra.mxu0 0.0
  %1004 = vmatprep.subr.mxu0 0.0
  %1005 = vmatpush1.xpose.msra.mxu0 0.0
  %1006 = vmatprep.mubr.f32.mxu0 0.0
  %1007 = vmatmul.mubr.f32.gmra.mrb[0].mxu0 %v932
  %v1008 = vpop.f32.mrb[0].mxu0
  %v1009 = vadd.f32 0.0, %v1008
  %v1010 = vpop.f32.mrb[0].mxu0
  %1011 = vdwg.mxu0
  %v1012 = vadd.f32 %v908, %v1009
  %v1013 = vld [vmem:[%s804 + $0x2] sm:$0xf]
  %v1014 = vld [vmem:[%s804 + $0xa] sm:$0xf]
  %v1015 = vld [vmem:[%s804 + $0x12] sm:$0xf]
  %v1016 = vld [vmem:[%s804 + $0x1a] sm:$0xf]
  %v1017 = vld [vmem:[%s804 + $0x32] sm:$0xf]
  %v1018 = vld [vmem:[%s804 + $0x3a] sm:$0xf]
  %v1019 = vld [vmem:[%s804 + $0x42] sm:$0xf]
  %v1020 = vld [vmem:[%s804 + $0x4a] sm:$0xf]
  %s1021 = scalar_lea.vmem %s3, 64
  %v1022 = vld [vmem:[%s1021] sm:$0xff]
  %v1031 = vcombine.low %v1013, %v1014
  %v1032 = vcombine.low %v1015, %v1016
  %v1033 = vcombine.low %v1017, %v1018
  %v1034 = vcombine.low %v1019, %v1020
  %v1036 = vsel %vm213, %v1022, 0
  %v1038 = vsel %vm213, %v1031, 0
  %v1040 = vsel %vm213, %v1032, 0
  %v1042 = vsel %vm213, %v1033, 0
  %v1044 = vsel %vm213, %v1034, 0
  %1046 = vmatprep.subr.mxu0 0.0
  %1047 = vmatpush1.xpose.msra.mxu0 %v1038
  %1048 = vmatprep.subr.mxu0 0.0
  %1049 = vmatpush1.xpose.msra.mxu0 %v1040
  %1050 = vmatprep.subr.mxu0 0.0
  %1051 = vmatpush1.xpose.msra.mxu0 %v1042
  %1052 = vmatprep.subr.mxu0 0.0
  %1053 = vmatpush1.xpose.msra.mxu0 %v1044
  %1054 = vmatprep.subr.mxu0 0.0
  %1055 = vmatpush1.xpose.msra.mxu0 0.0
  %1056 = vmatprep.subr.mxu0 0.0
  %1057 = vmatpush1.xpose.msra.mxu0 0.0
  %1058 = vmatprep.subr.mxu0 0.0
  %1059 = vmatpush1.xpose.msra.mxu0 0.0
  %1060 = vmatprep.subr.mxu0 0.0
  %1061 = vmatpush1.xpose.msra.mxu0 0.0
  %1062 = vmatprep.subr.mxu0 0.0
  %1063 = vmatpush1.xpose.msra.mxu0 0.0
  %1064 = vmatprep.subr.mxu0 0.0
  %1065 = vmatpush1.xpose.msra.mxu0 0.0
  %1066 = vmatprep.subr.mxu0 0.0
  %1067 = vmatpush1.xpose.msra.mxu0 0.0
  %1068 = vmatprep.subr.mxu0 0.0
  %1069 = vmatpush1.xpose.msra.mxu0 0.0
  %1070 = vmatprep.subr.mxu0 0.0
  %1071 = vmatpush1.xpose.msra.mxu0 0.0
  %1072 = vmatprep.subr.mxu0 0.0
  %1073 = vmatpush1.xpose.msra.mxu0 0.0
  %1074 = vmatprep.subr.mxu0 0.0
  %1075 = vmatpush1.xpose.msra.mxu0 0.0
  %1076 = vmatprep.subr.mxu0 0.0
  %1077 = vmatpush1.xpose.msra.mxu0 0.0
  %1078 = vmatprep.subr.mxu0 0.0
  %1079 = vmatpush1.xpose.msra.mxu0 0.0
  %1080 = vmatprep.subr.mxu0 0.0
  %1081 = vmatpush1.xpose.msra.mxu0 0.0
  %1082 = vmatprep.subr.mxu0 0.0
  %1083 = vmatpush1.xpose.msra.mxu0 0.0
  %1084 = vmatprep.subr.mxu0 0.0
  %1085 = vmatpush1.xpose.msra.mxu0 0.0
  %1086 = vmatprep.subr.mxu0 0.0
  %1087 = vmatpush1.xpose.msra.mxu0 0.0
  %1088 = vmatprep.subr.mxu0 0.0
  %1089 = vmatpush1.xpose.msra.mxu0 0.0
  %1090 = vmatprep.subr.mxu0 0.0
  %1091 = vmatpush1.xpose.msra.mxu0 0.0
  %1092 = vmatprep.subr.mxu0 0.0
  %1093 = vmatpush1.xpose.msra.mxu0 0.0
  %1094 = vmatprep.subr.mxu0 0.0
  %1095 = vmatpush1.xpose.msra.mxu0 0.0
  %1096 = vmatprep.subr.mxu0 0.0
  %1097 = vmatpush1.xpose.msra.mxu0 0.0
  %1098 = vmatprep.subr.mxu0 0.0
  %1099 = vmatpush1.xpose.msra.mxu0 0.0
  %1100 = vmatprep.subr.mxu0 0.0
  %1101 = vmatpush1.xpose.msra.mxu0 0.0
  %1102 = vmatprep.subr.mxu0 0.0
  %1103 = vmatpush1.xpose.msra.mxu0 0.0
  %1104 = vmatprep.subr.mxu0 0.0
  %1105 = vmatpush1.xpose.msra.mxu0 0.0
  %1106 = vmatprep.subr.mxu0 0.0
  %1107 = vmatpush1.xpose.msra.mxu0 0.0
  %1108 = vmatprep.subr.mxu0 0.0
  %1109 = vmatpush1.xpose.msra.mxu0 0.0
  %1110 = vmatprep.mubr.f32.mxu0 0.0
  %1111 = vmatmul.mubr.f32.gmra.mrb[0].mxu0 %v1036
  %v1112 = vpop.f32.mrb[0].mxu0
  %v1113 = vadd.f32 0.0, %v1112
  %v1114 = vpop.f32.mrb[0].mxu0
  %1115 = vdwg.mxu0
  %v1116 = vadd.f32 %v1012, %v1113
  %v1117 = vld [vmem:[%s4] sm:$0xff]
  %1119 = vset.pattern.permute.xlu0 0
  %1120 = vperm.xlu0 %1119, %v1117
  %v1121 = vpop.permute.xlu0 %1120
  %v1123 = vadd.f32 %v1116, %v1121
  %v1124 = vmax.f32 %v1123, 0.0
  %v1125 = vld [vmem:[%s7] sm:$0xff]
  %v1126 = vld [vmem:[%s7 + $0x8] sm:$0xff]
  %v1127 = vld [vmem:[%s7 + $0x10] sm:$0xff]
  %v1128 = vld [vmem:[%s7 + $0x18] sm:$0xff]
  %v1129 = vld [vmem:[%s5] sm:$0xff]
  %v1130 = vld [vmem:[%s5 + $0x8] sm:$0xff]
  %v1131 = vld [vmem:[%s5 + $0x10] sm:$0x1f]
  %v1132 = vld [vmem:[%s6] sm:$0xff]
  %v1133 = vld [vmem:[%s6 + $0x8] sm:$0xff]
  %v1134 = vld [vmem:[%s6 + $0x10] sm:$0x1f]
  %vm1135 = vcmask 130048
  %v1137 = vsel %vm1135, %v1124, 0
  %1139 = vmatprep.subr.mxu0 %v1126
  %1140 = vmatpush1.msra.mxu0 %v1125
  %1141 = vmatprep.subr.mxu0 %v1128
  %1142 = vmatpush1.msra.mxu0 %v1127
  %1143 = vmatprep.subr.mxu0 0.0
  %1144 = vmatpush1.msra.mxu0 0.0
  %1145 = vmatprep.subr.mxu0 0.0
  %1146 = vmatpush1.msra.mxu0 0.0
  %1147 = vmatprep.subr.mxu0 0.0
  %1148 = vmatpush1.msra.mxu0 0.0
  %1149 = vmatprep.subr.mxu0 0.0
  %1150 = vmatpush1.msra.mxu0 0.0
  %1151 = vmatprep.subr.mxu0 0.0
  %1152 = vmatpush1.msra.mxu0 0.0
  %1153 = vmatprep.subr.mxu0 0.0
  %1154 = vmatpush1.msra.mxu0 0.0
  %1155 = vmatprep.subr.mxu0 0.0
  %1156 = vmatpush1.msra.mxu0 0.0
  %1157 = vmatprep.subr.mxu0 0.0
  %1158 = vmatpush1.msra.mxu0 0.0
  %1159 = vmatprep.subr.mxu0 0.0
  %1160 = vmatpush1.msra.mxu0 0.0
  %1161 = vmatprep.subr.mxu0 0.0
  %1162 = vmatpush1.msra.mxu0 0.0
  %1163 = vmatprep.subr.mxu0 0.0
  %1164 = vmatpush1.msra.mxu0 0.0
  %1165 = vmatprep.subr.mxu0 0.0
  %1166 = vmatpush1.msra.mxu0 0.0
  %1167 = vmatprep.subr.mxu0 0.0
  %1168 = vmatpush1.msra.mxu0 0.0
  %1169 = vmatprep.subr.mxu0 0.0
  %1170 = vmatpush1.msra.mxu0 0.0
  %1171 = vmatprep.subr.mxu0 0.0
  %1172 = vmatpush1.msra.mxu0 0.0
  %1173 = vmatprep.subr.mxu0 0.0
  %1174 = vmatpush1.msra.mxu0 0.0
  %1175 = vmatprep.subr.mxu0 0.0
  %1176 = vmatpush1.msra.mxu0 0.0
  %1177 = vmatprep.subr.mxu0 0.0
  %1178 = vmatpush1.msra.mxu0 0.0
  %1179 = vmatprep.subr.mxu0 0.0
  %1180 = vmatpush1.msra.mxu0 0.0
  %1181 = vmatprep.subr.mxu0 0.0
  %1182 = vmatpush1.msra.mxu0 0.0
  %1183 = vmatprep.subr.mxu0 0.0
  %1184 = vmatpush1.msra.mxu0 0.0
  %1185 = vmatprep.subr.mxu0 0.0
  %1186 = vmatpush1.msra.mxu0 0.0
  %1187 = vmatprep.subr.mxu0 0.0
  %1188 = vmatpush1.msra.mxu0 0.0
  %1189 = vmatprep.subr.mxu0 0.0
  %1190 = vmatpush1.msra.mxu0 0.0
  %1191 = vmatprep.subr.mxu0 0.0
  %1192 = vmatpush1.msra.mxu0 0.0
  %1193 = vmatprep.subr.mxu0 0.0
  %1194 = vmatpush1.msra.mxu0 0.0
  %1195 = vmatprep.subr.mxu0 0.0
  %1196 = vmatpush1.msra.mxu0 0.0
  %1197 = vmatprep.subr.mxu0 0.0
  %1198 = vmatpush1.msra.mxu0 0.0
  %1199 = vmatprep.subr.mxu0 0.0
  %1200 = vmatpush1.msra.mxu0 0.0
  %1201 = vmatprep.subr.mxu0 0.0
  %1202 = vmatpush1.msra.mxu0 0.0
  %1203 = vmatprep.mubr.f32.mxu0 0.0
  %1204 = vmatmul.mubr.f32.gmra.mrb[0].mxu0 %v1137
  %v1205 = vpop.f32.mrb[0].mxu0
  %v1206 = vadd.f32 0.0, %v1205
  %v1207 = vpop.f32.mrb[0].mxu0
  %v1208 = vadd.f32 0.0, %v1207
  %1209 = vdwg.mxu0
  %1211 = vset.pattern.permute.xlu0 0
  %1212 = vperm.xlu0 %1211, %v1132
  %v1213 = vpop.permute.xlu0 %1212
  %1216 = vset.pattern.permute.xlu0 0
  %1217 = vperm.xlu0 %1216, %v1133
  %v1218 = vpop.permute.xlu0 %1217
  %1221 = vset.pattern.permute.xlu0 0
  %1222 = vperm.xlu0 %1221, %v1134
  %v1223 = vpop.permute.xlu0 %1222
  %vm1225 = vcmask 64512
  %v1227 = vsel %vm1225, %v1129, 0
  %v1230 = vsel %vm1225, %v1130, 0
  %v1233 = vsel %vm1225, %v1131, 0
  %1235 = vmatprep.subr.mxu0 %v1208
  %1236 = vmatpush1.msra.mxu0 %v1206
  %1237 = vmatprep.subr.mxu0 0.0
  %1238 = vmatpush1.msra.mxu0 0.0
  %1239 = vmatprep.subr.mxu0 0.0
  %1240 = vmatpush1.msra.mxu0 0.0
  %1241 = vmatprep.subr.mxu0 0.0
  %1242 = vmatpush1.msra.mxu0 0.0
  %1243 = vmatprep.subr.mxu0 0.0
  %1244 = vmatpush1.msra.mxu0 0.0
  %1245 = vmatprep.subr.mxu0 0.0
  %1246 = vmatpush1.msra.mxu0 0.0
  %1247 = vmatprep.subr.mxu0 0.0
  %1248 = vmatpush1.msra.mxu0 0.0
  %1249 = vmatprep.subr.mxu0 0.0
  %1250 = vmatpush1.msra.mxu0 0.0
  %1251 = vmatprep.subr.mxu0 0.0
  %1252 = vmatpush1.msra.mxu0 0.0
  %1253 = vmatprep.subr.mxu0 0.0
  %1254 = vmatpush1.msra.mxu0 0.0
  %1255 = vmatprep.subr.mxu0 0.0
  %1256 = vmatpush1.msra.mxu0 0.0
  %1257 = vmatprep.subr.mxu0 0.0
  %1258 = vmatpush1.msra.mxu0 0.0
  %1259 = vmatprep.subr.mxu0 0.0
  %1260 = vmatpush1.msra.mxu0 0.0
  %1261 = vmatprep.subr.mxu0 0.0
  %1262 = vmatpush1.msra.mxu0 0.0
  %1263 = vmatprep.subr.mxu0 0.0
  %1264 = vmatpush1.msra.mxu0 0.0
  %1265 = vmatprep.subr.mxu0 0.0
  %1266 = vmatpush1.msra.mxu0 0.0
  %1267 = vmatprep.subr.mxu0 0.0
  %1268 = vmatpush1.msra.mxu0 0.0
  %1269 = vmatprep.subr.mxu0 0.0
  %1270 = vmatpush1.msra.mxu0 0.0
  %1271 = vmatprep.subr.mxu0 0.0
  %1272 = vmatpush1.msra.mxu0 0.0
  %1273 = vmatprep.subr.mxu0 0.0
  %1274 = vmatpush1.msra.mxu0 0.0
  %1275 = vmatprep.subr.mxu0 0.0
  %1276 = vmatpush1.msra.mxu0 0.0
  %1277 = vmatprep.subr.mxu0 0.0
  %1278 = vmatpush1.msra.mxu0 0.0
  %1279 = vmatprep.subr.mxu0 0.0
  %1280 = vmatpush1.msra.mxu0 0.0
  %1281 = vmatprep.subr.mxu0 0.0
  %1282 = vmatpush1.msra.mxu0 0.0
  %1283 = vmatprep.subr.mxu0 0.0
  %1284 = vmatpush1.msra.mxu0 0.0
  %1285 = vmatprep.subr.mxu0 0.0
  %1286 = vmatpush1.msra.mxu0 0.0
  %1287 = vmatprep.subr.mxu0 0.0
  %1288 = vmatpush1.msra.mxu0 0.0
  %1289 = vmatprep.subr.mxu0 0.0
  %1290 = vmatpush1.msra.mxu0 0.0
  %1291 = vmatprep.subr.mxu0 0.0
  %1292 = vmatpush1.msra.mxu0 0.0
  %1293 = vmatprep.subr.mxu0 0.0
  %1294 = vmatpush1.msra.mxu0 0.0
  %1295 = vmatprep.subr.mxu0 0.0
  %1296 = vmatpush1.msra.mxu0 0.0
  %1297 = vmatprep.subr.mxu0 0.0
  %1298 = vmatpush1.msra.mxu0 0.0
  %1299 = vmatprep.mubr.f32.mxu0 0.0
  %1300 = vmatmul.mubr.f32.gmra.mrb[0].mxu0 %v1227
  %v1301 = vpop.f32.mrb[0].mxu0
  %v1302 = vadd.f32 %v1213, %v1301
  %v1303 = vpop.f32.mrb[0].mxu0
  %v1304 = vadd.f32 %v1213, %v1303
  %1305 = vmatprep.mubr.f32.mxu0 0.0
  %1306 = vmatmul.mubr.f32.gmra.mrb[0].mxu0 %v1230
  %v1307 = vpop.f32.mrb[0].mxu0
  %v1308 = vadd.f32 %v1218, %v1307
  %v1309 = vpop.f32.mrb[0].mxu0
  %v1310 = vadd.f32 %v1218, %v1309
  %1311 = vmatprep.mubr.f32.mxu0 0.0
  %1312 = vmatmul.mubr.f32.gmra.mrb[0].mxu0 %v1233
  %v1313 = vpop.f32.mrb[0].mxu0
  %v1314 = vadd.f32 %v1223, %v1313
  %v1315 = vpop.f32.mrb[0].mxu0
  %v1316 = vadd.f32 %v1223, %v1315
  %1317 = vdwg.mxu0
  %1318 = vst [vmem:[%s8] sm:$0xff] %v1302
  %1319 = vst [vmem:[%s8 + $0x8] sm:$0xff] %v1304
  %1320 = vst [vmem:[%s8 + $0x10] sm:$0xff] %v1308
  %1321 = vst [vmem:[%s8 + $0x18] sm:$0xff] %v1310
  %1322 = vst [vmem:[%s8 + $0x20] sm:$0x1f] %v1314
  %1323 = vst [vmem:[%s8 + $0x28] sm:$0x1f] %v1316
  %1324 = vrot.lane.b32.xlu0 %v1124, 112
  %v1325 = vpop.permute.xlu0 %1324
  %v1326 = vsel %vm1135, %v1325, 0
  %1328 = vmatprep.subr.mxu0 %v1126
  %1329 = vmatpush1.msra.mxu0 %v1125
  %1330 = vmatprep.subr.mxu0 %v1128
  %1331 = vmatpush1.msra.mxu0 %v1127
  %1332 = vmatprep.subr.mxu0 0.0
  %1333 = vmatpush1.msra.mxu0 0.0
  %1334 = vmatprep.subr.mxu0 0.0
  %1335 = vmatpush1.msra.mxu0 0.0
  %1336 = vmatprep.subr.mxu0 0.0
  %1337 = vmatpush1.msra.mxu0 0.0
  %1338 = vmatprep.subr.mxu0 0.0
  %1339 = vmatpush1.msra.mxu0 0.0
  %1340 = vmatprep.subr.mxu0 0.0
  %1341 = vmatpush1.msra.mxu0 0.0
  %1342 = vmatprep.subr.mxu0 0.0
  %1343 = vmatpush1.msra.mxu0 0.0
  %1344 = vmatprep.subr.mxu0 0.0
  %1345 = vmatpush1.msra.mxu0 0.0
  %1346 = vmatprep.subr.mxu0 0.0
  %1347 = vmatpush1.msra.mxu0 0.0
  %1348 = vmatprep.subr.mxu0 0.0
  %1349 = vmatpush1.msra.mxu0 0.0
  %1350 = vmatprep.subr.mxu0 0.0
  %1351 = vmatpush1.msra.mxu0 0.0
  %1352 = vmatprep.subr.mxu0 0.0
  %1353 = vmatpush1.msra.mxu0 0.0
  %1354 = vmatprep.subr.mxu0 0.0
  %1355 = vmatpush1.msra.mxu0 0.0
  %1356 = vmatprep.subr.mxu0 0.0
  %1357 = vmatpush1.msra.mxu0 0.0
  %1358 = vmatprep.subr.mxu0 0.0
  %1359 = vmatpush1.msra.mxu0 0.0
  %1360 = vmatprep.subr.mxu0 0.0
  %1361 = vmatpush1.msra.mxu0 0.0
  %1362 = vmatprep.subr.mxu0 0.0
  %1363 = vmatpush1.msra.mxu0 0.0
  %1364 = vmatprep.subr.mxu0 0.0
  %1365 = vmatpush1.msra.mxu0 0.0
  %1366 = vmatprep.subr.mxu0 0.0
  %1367 = vmatpush1.msra.mxu0 0.0
  %1368 = vmatprep.subr.mxu0 0.0
  %1369 = vmatpush1.msra.mxu0 0.0
  %1370 = vmatprep.subr.mxu0 0.0
  %1371 = vmatpush1.msra.mxu0 0.0
  %1372 = vmatprep.subr.mxu0 0.0
  %1373 = vmatpush1.msra.mxu0 0.0
  %1374 = vmatprep.subr.mxu0 0.0
  %1375 = vmatpush1.msra.mxu0 0.0
  %1376 = vmatprep.subr.mxu0 0.0
  %1377 = vmatpush1.msra.mxu0 0.0
  %1378 = vmatprep.subr.mxu0 0.0
  %1379 = vmatpush1.msra.mxu0 0.0
  %1380 = vmatprep.subr.mxu0 0.0
  %1381 = vmatpush1.msra.mxu0 0.0
  %1382 = vmatprep.subr.mxu0 0.0
  %1383 = vmatpush1.msra.mxu0 0.0
  %1384 = vmatprep.subr.mxu0 0.0
  %1385 = vmatpush1.msra.mxu0 0.0
  %1386 = vmatprep.subr.mxu0 0.0
  %1387 = vmatpush1.msra.mxu0 0.0
  %1388 = vmatprep.subr.mxu0 0.0
  %1389 = vmatpush1.msra.mxu0 0.0
  %1390 = vmatprep.subr.mxu0 0.0
  %1391 = vmatpush1.msra.mxu0 0.0
  %1392 = vmatprep.mubr.f32.mxu0 0.0
  %1393 = vmatmul.mubr.f32.gmra.mrb[0].mxu0 %v1326
  %v1394 = vpop.f32.mrb[0].mxu0
  %v1395 = vadd.f32 0.0, %v1394
  %v1396 = vpop.f32.mrb[0].mxu0
  %v1397 = vadd.f32 0.0, %v1396
  %1398 = vdwg.mxu0
  %1399 = vmatprep.subr.mxu0 %v1397
  %1400 = vmatpush1.msra.mxu0 %v1395
  %1401 = vmatprep.subr.mxu0 0.0
  %1402 = vmatpush1.msra.mxu0 0.0
  %1403 = vmatprep.subr.mxu0 0.0
  %1404 = vmatpush1.msra.mxu0 0.0
  %1405 = vmatprep.subr.mxu0 0.0
  %1406 = vmatpush1.msra.mxu0 0.0
  %1407 = vmatprep.subr.mxu0 0.0
  %1408 = vmatpush1.msra.mxu0 0.0
  %1409 = vmatprep.subr.mxu0 0.0
  %1410 = vmatpush1.msra.mxu0 0.0
  %1411 = vmatprep.subr.mxu0 0.0
  %1412 = vmatpush1.msra.mxu0 0.0
  %1413 = vmatprep.subr.mxu0 0.0
  %1414 = vmatpush1.msra.mxu0 0.0
  %1415 = vmatprep.subr.mxu0 0.0
  %1416 = vmatpush1.msra.mxu0 0.0
  %1417 = vmatprep.subr.mxu0 0.0
  %1418 = vmatpush1.msra.mxu0 0.0
  %1419 = vmatprep.subr.mxu0 0.0
  %1420 = vmatpush1.msra.mxu0 0.0
  %1421 = vmatprep.subr.mxu0 0.0
  %1422 = vmatpush1.msra.mxu0 0.0
  %1423 = vmatprep.subr.mxu0 0.0
  %1424 = vmatpush1.msra.mxu0 0.0
  %1425 = vmatprep.subr.mxu0 0.0
  %1426 = vmatpush1.msra.mxu0 0.0
  %1427 = vmatprep.subr.mxu0 0.0
  %1428 = vmatpush1.msra.mxu0 0.0
  %1429 = vmatprep.subr.mxu0 0.0
  %1430 = vmatpush1.msra.mxu0 0.0
  %1431 = vmatprep.subr.mxu0 0.0
  %1432 = vmatpush1.msra.mxu0 0.0
  %1433 = vmatprep.subr.mxu0 0.0
  %1434 = vmatpush1.msra.mxu0 0.0
  %1435 = vmatprep.subr.mxu0 0.0
  %1436 = vmatpush1.msra.mxu0 0.0
  %1437 = vmatprep.subr.mxu0 0.0
  %1438 = vmatpush1.msra.mxu0 0.0
  %1439 = vmatprep.subr.mxu0 0.0
  %1440 = vmatpush1.msra.mxu0 0.0
  %1441 = vmatprep.subr.mxu0 0.0
  %1442 = vmatpush1.msra.mxu0 0.0
  %1443 = vmatprep.subr.mxu0 0.0
  %1444 = vmatpush1.msra.mxu0 0.0
  %1445 = vmatprep.subr.mxu0 0.0
  %1446 = vmatpush1.msra.mxu0 0.0
  %1447 = vmatprep.subr.mxu0 0.0
  %1448 = vmatpush1.msra.mxu0 0.0
  %1449 = vmatprep.subr.mxu0 0.0
  %1450 = vmatpush1.msra.mxu0 0.0
  %1451 = vmatprep.subr.mxu0 0.0
  %1452 = vmatpush1.msra.mxu0 0.0
  %1453 = vmatprep.subr.mxu0 0.0
  %1454 = vmatpush1.msra.mxu0 0.0
  %1455 = vmatprep.subr.mxu0 0.0
  %1456 = vmatpush1.msra.mxu0 0.0
  %1457 = vmatprep.subr.mxu0 0.0
  %1458 = vmatpush1.msra.mxu0 0.0
  %1459 = vmatprep.subr.mxu0 0.0
  %1460 = vmatpush1.msra.mxu0 0.0
  %1461 = vmatprep.subr.mxu0 0.0
  %1462 = vmatpush1.msra.mxu0 0.0
  %1463 = vmatprep.mubr.f32.mxu0 0.0
  %1464 = vmatmul.mubr.f32.gmra.mrb[0].mxu0 %v1227
  %v1465 = vpop.f32.mrb[0].mxu0
  %v1466 = vadd.f32 %v1213, %v1465
  %v1467 = vpop.f32.mrb[0].mxu0
  %v1468 = vadd.f32 %v1213, %v1467
  %1469 = vmatprep.mubr.f32.mxu0 0.0
  %1470 = vmatmul.mubr.f32.gmra.mrb[0].mxu0 %v1230
  %v1471 = vpop.f32.mrb[0].mxu0
  %v1472 = vadd.f32 %v1218, %v1471
  %v1473 = vpop.f32.mrb[0].mxu0
  %v1474 = vadd.f32 %v1218, %v1473
  %1475 = vmatprep.mubr.f32.mxu0 0.0
  %1476 = vmatmul.mubr.f32.gmra.mrb[0].mxu0 %v1233
  %v1477 = vpop.f32.mrb[0].mxu0
  %v1478 = vadd.f32 %v1223, %v1477
  %v1479 = vpop.f32.mrb[0].mxu0
  %v1480 = vadd.f32 %v1223, %v1479
  %1481 = vdwg.mxu0
  %s1482 = scalar_lea.vmem %s8, 48
  %1483 = vst [vmem:[%s1482] sm:$0xff] %v1466
  %1484 = vst [vmem:[%s1482 + $0x8] sm:$0xff] %v1468
  %1485 = vst [vmem:[%s1482 + $0x10] sm:$0xff] %v1472
  %1486 = vst [vmem:[%s1482 + $0x18] sm:$0xff] %v1474
  %1487 = vst [vmem:[%s1482 + $0x20] sm:$0x1f] %v1478
  %1488 = vst [vmem:[%s1482 + $0x28] sm:$0x1f] %v1480
  // Predicated region
  $region34: #{tpu_custom_call.1} parent=0 // pred_check
    _
  $region35: #{tpu_custom_call.1} parent=0 // pred_check_branch
    %1490 = sbr.rel (0) target = $region37
  $region36: #{tpu_custom_call.1} parent=0 // pred_region
    _
  $region37: #{tpu_custom_call.1} parent=0 // pred_fallthru
    _
  // Predicated region
  $region38: #{tpu_custom_call.1} parent=0 // pred_check
    _
  $region39: #{tpu_custom_call.1} parent=0 // pred_check_branch
    %1492 = sbr.rel (0) target = $region41
  $region40: #{tpu_custom_call.1} parent=0 // pred_region
    _
  $region41: #{tpu_custom_call.1} parent=0 // pred_fallthru
    _

</llo_original>
